<compile_context>
chip_gen: v7x
topology: tpu7x:2x2x1
jax: 0.10.0
libtpu: 0.0.40
codegen_flags: <defaults>
</compile_context>

<pallas_src>
import math

import jax
import jax.numpy as jnp
from jax.experimental import pallas as pl
from jax.experimental.pallas import tpu as pltpu

# ----------------------------- config ---------------------------------------
B = 2          # batch
S = 8          # src_len
D = 32         # d_model
H = 4          # heads
DH = D // H    # dim per head
DFF = 64       # d_ff
EPS = 1e-6
NEG_INF = -1e18
SEG = 128      # lane-aligned segment width for packed parameter arrays


# ----------------------------- kernel ----------------------------------------
def encoder_layer_kernel(x_ref, mask_ref, wa_ref, w2_ref, bias_ref, out_ref):
    x = x_ref[...]                                   # (B*S, D) f32

    # ---- unpack parameters; every segment starts on a 128-lane boundary -----
    wqkv = wa_ref[:, 0:3 * D]                        # (D, 3D)  LN1 gain + q-scale folded in
    wo = wa_ref[:, SEG:SEG + D]                      # (D, D)
    w1 = wa_ref[:, 2 * SEG:2 * SEG + DFF]            # (D, DFF) LN2 gain folded in
    w2 = w2_ref[...]                                 # (DFF, D)

    bqkv = bias_ref[:, 0:3 * D]                      # (1, 3D)
    b1 = bias_ref[:, SEG:SEG + DFF]                  # (1, DFF)
    bo = bias_ref[:, 2 * SEG:2 * SEG + D]            # (1, D)
    b2 = bias_ref[:, 3 * SEG:3 * SEG + D]            # (1, D)

    def norm(t):  # LayerNorm without gain/bias (folded into downstream matmuls)
        mu = jnp.mean(t, axis=-1, keepdims=True)
        var = jnp.mean((t - mu) ** 2, axis=-1, keepdims=True)
        return (t - mu) * jax.lax.rsqrt(var + EPS)

    # ---- pre-norm + fused Q/K/V projection (single MXU pass) ----------------
    x_norm = norm(x)
    qkv = jnp.dot(x_norm, wqkv, preferred_element_type=jnp.float32) + bqkv   # (B*S, 3D)
    qkv3 = qkv.reshape(B, S, 3 * D)      # single reshape; per-head slices taken from this

    # key-padding additive bias, computed once: (B, 1, S), 1 == padded key
    kbias = jnp.where(mask_ref[...] != 0, jnp.float32(NEG_INF), jnp.float32(0.0))

    # ---- multi-head self-attention: batched over B, static loop over heads --
    # Per-head score/softmax/ctx iterations are fully independent (no serial
    # chain); all head contexts are concatenated once and pushed through W_o in
    # a single matmul.
    ctx_heads = []
    for h in range(H):
        lo = h * DH
        qh = qkv3[:, :, lo:lo + DH]                                # (B, S, DH), already q-scaled
        kh = qkv3[:, :, D + lo:D + lo + DH]
        vh = qkv3[:, :, 2 * D + lo:2 * D + lo + DH]
        s = jnp.einsum("bqd,bkd->bqk", qh, kh,
                       preferred_element_type=jnp.float32)         # (B, S, S)
        s = s + kbias                                              # broadcast over query rows
        m = jnp.max(s, axis=-1, keepdims=True)
        e = jnp.exp(s - m)
        p = e * pl.reciprocal(jnp.sum(e, axis=-1, keepdims=True), approx=False)
        ctx_heads.append(jnp.einsum("bqk,bkd->bqd", p, vh,
                                    preferred_element_type=jnp.float32))

    ctx = jnp.concatenate(ctx_heads, axis=-1).reshape(B * S, D)    # (B*S, D)
    attn_out = jnp.dot(ctx, wo, preferred_element_type=jnp.float32) + bo   # ONE W_o matmul

    # ---- residual (dropout == identity in eval) ------------------------------
    out1 = attn_out + x

    # ---- PositionwiseFeedForward: LN -> W1 -> relu -> W2 -> +residual --------
    y = norm(out1)
    inter = jnp.maximum(jnp.dot(y, w1, preferred_element_type=jnp.float32) + b1, 0.0)
    ffn = jnp.dot(inter, w2, preferred_element_type=jnp.float32) + b2

    out_ref[...] = ffn + out1                                      # flat (B*S, D) store


# ----------------------------- param prep (one-time) ---------------------------
def prepare_params(p):
    """One-time constant folding + lane-aligned packing (load-time, not per call).

    - fuses wq|wk|wv into a single (D, 3D) matmul,
    - folds the 1/sqrt(DH) query scale into the q columns,
    - folds LayerNorm gains/biases into the projection that consumes each LN,
    - packs everything into 3 arrays (5 input DMAs total), with every segment
      padded so it starts on a 128-lane boundary (zero-cost views in-kernel).
    """
    g1, c1 = p["ln1_w"][0], p["ln1_b"][0]            # (D,)
    g2, c2 = p["ln2_w"][0], p["ln2_b"][0]
    q_scale = 1.0 / math.sqrt(DH)

    wqkv0 = jnp.concatenate([p["wq"] * q_scale, p["wk"], p["wv"]], axis=1)   # (D, 3D)
    bqkv0 = jnp.concatenate([p["bq"] * q_scale, p["bk"], p["bv"]], axis=1)   # (1, 3D)
    wqkv = g1[:, None] * wqkv0                       # LN1 gain folded into weights
    bqkv = c1[None, :] @ wqkv0 + bqkv0               # LN1 bias folded into biases

    w1 = g2[:, None] * p["w1"]                       # LN2 gain folded
    b1 = c2[None, :] @ p["w1"] + p["b1"]             # LN2 bias folded

    def pad_lanes(a):                                # pad last dim up to one 128-lane tile
        return jnp.pad(a, ((0, 0), (0, SEG - a.shape[1])))

    w_a = jnp.concatenate(
        [pad_lanes(wqkv), pad_lanes(p["wo"]), pad_lanes(w1)], axis=1)        # (D, 3*128)
    bias_pack = jnp.concatenate(
        [pad_lanes(bqkv), pad_lanes(b1), pad_lanes(p["bo"]), pad_lanes(p["b2"])],
        axis=1)                                                              # (1, 4*128)
    return w_a, p["w2"], bias_pack


# ----------------------------- wrapper ----------------------------------------
def transformer_encoder_layer(inputs, mask, prepared):
    """inputs: (B, S, D) f32, mask: (B, 1, S) int32 (1 == pad)."""
    w_a, w2, bias_pack = prepared
    x2d = inputs.reshape(B * S, D)                   # free layout plumbing outside the kernel

    flops = (2 * B * S * D * 3 * D                   # fused qkv projection
             + 2 * B * H * S * S * DH * 2            # scores + ctx
             + 2 * B * S * D * D                     # W_o
             + 2 * B * S * D * DFF                   # W_1
             + 2 * B * S * DFF * D)                  # W_2
    bytes_accessed = 4 * (x2d.size + mask.size + w_a.size + w2.size
                          + bias_pack.size + B * S * D)
    cost = pl.CostEstimate(flops=flops,
                           transcendentals=B * H * S * S + 2 * B * S,
                           bytes_accessed=bytes_accessed)

    vmem = pltpu.MemorySpace.VMEM
    out2d = pl.pallas_call(
        encoder_layer_kernel,
        out_shape=jax.ShapeDtypeStruct((B * S, D), jnp.float32),
        in_specs=[pl.BlockSpec(memory_space=vmem)] * 5,
        out_specs=pl.BlockSpec(memory_space=vmem),
        cost_estimate=cost,
    )(x2d, mask, w_a, w2, bias_pack)
    return out2d.reshape(B, S, D)                    # free reshape in the wrapper


# ----------------------------- pure-JAX reference ------------------------------
def reference(inputs, mask, p):
    def ln(x, w, b):
        mu = jnp.mean(x, axis=-1, keepdims=True)
        var = jnp.mean((x - mu) ** 2, axis=-1, keepdims=True)
        return (x - mu) / jnp.sqrt(var + EPS) * w[0] + b[0]

    x_norm = ln(inputs, p["ln1_w"], p["ln1_b"])
    q = x_norm @ p["wq"] + p["bq"][0]
    k = x_norm @ p["wk"] + p["bk"][0]
    v = x_norm @ p["wv"] + p["bv"][0]

    def split(t):  # (B,S,D) -> (B,H,S,DH)
        return t.reshape(B, S, H, DH).transpose(0, 2, 1, 3)

    qh, kh, vh = split(q) / math.sqrt(DH), split(k), split(v)
    scores = jnp.einsum("bhqd,bhkd->bhqk", qh, kh)
    key_pad = (mask != 0)[:, None, :, :]                     # (B,1,1,S)
    scores = jnp.where(key_pad, NEG_INF, scores)
    attn = jax.nn.softmax(scores, axis=-1)
    ctx = jnp.einsum("bhqk,bhkd->bhqd", attn, vh).transpose(0, 2, 1, 3).reshape(B, S, D)
    attn_out = ctx @ p["wo"] + p["bo"][0]
    out1 = attn_out + inputs

    y = ln(out1, p["ln2_w"], p["ln2_b"])
    inter = jnp.maximum(y @ p["w1"] + p["b1"][0], 0.0)
    return inter @ p["w2"] + p["b2"][0] + out1


# ----------------------------- main --------------------------------------------
if __name__ == "__main__":
    key = jax.random.PRNGKey(0)
    keys = jax.random.split(key, 20)

    def w(k, shape, scale=0.02):
        return (scale * jax.random.normal(k, shape)).astype(jnp.float32)

    params = {
        # NON-trivial LayerNorm params so the gain/bias constant-folding in
        # prepare_params is actually exercised by the test.
        "ln1_w": (1.0 + 0.1 * jax.random.normal(keys[13], (1, D))).astype(jnp.float32),
        "ln1_b": (0.05 * jax.random.normal(keys[14], (1, D))).astype(jnp.float32),
        "ln2_w": (1.0 + 0.1 * jax.random.normal(keys[15], (1, D))).astype(jnp.float32),
        "ln2_b": (0.05 * jax.random.normal(keys[16], (1, D))).astype(jnp.float32),
        # attention projections, stored as (in, out) = transposed nn.Linear weights
        "wq": w(keys[0], (D, D)), "bq": w(keys[1], (1, D)),
        "wk": w(keys[2], (D, D)), "bk": w(keys[3], (1, D)),
        "wv": w(keys[4], (D, D)), "bv": w(keys[5], (1, D)),
        "wo": w(keys[6], (D, D)), "bo": w(keys[7], (1, D)),
        # feed-forward
        "w1": w(keys[8], (D, DFF)), "b1": w(keys[9], (1, DFF)),
        "w2": w(keys[10], (DFF, D)), "b2": w(keys[11], (1, D)),
    }

    inputs = jax.random.normal(keys[12], (B, S, D), jnp.float32)
    # mask (B, 1, S): last two positions of batch element 1 are padding
    mask = jnp.zeros((B, 1, S), jnp.int32).at[1, 0, S - 2:].set(1)

    prepared = prepare_params(params)            # one-time fold + pack
    out = transformer_encoder_layer(inputs, mask, prepared)
    out = jax.block_until_ready(out)

    ref = reference(inputs, mask, params)
    assert out.shape == (B, S, D)
    assert jnp.allclose(out, ref, atol=1e-4, rtol=1e-4), (
        f"max abs err {jnp.max(jnp.abs(out - ref))}")

    print("KERNEL_OK")
</pallas_src>

<mosaic_0001>
module attributes {stable_mosaic.version = 11 : i64} {
  func.func @encoder_layer_kernel(%arg0: memref<16x32xf32, #tpu.memory_space<vmem>>, %arg1: memref<2x1x8xi32, #tpu.memory_space<vmem>>, %arg2: memref<32x384xf32, #tpu.memory_space<vmem>>, %arg3: memref<64x32xf32, #tpu.memory_space<vmem>>, %arg4: memref<1x512xf32, #tpu.memory_space<vmem>>, %arg5: memref<16x32xf32, #tpu.memory_space<vmem>>) attributes {dimension_semantics = [], scalar_prefetch = 0 : i64, scratch_operands = 0 : i64, tpu.core_type = #tpu.core_type<tc>} {
    %c0 = arith.constant 0 : index
    %c0_0 = arith.constant 0 : index
    %0 = vector.load %arg0[%c0, %c0_0] : memref<16x32xf32, #tpu.memory_space<vmem>>, vector<16x32xf32>
    %c0_1 = arith.constant 0 : index
    %c0_2 = arith.constant 0 : index
    %1 = vector.load %arg2[%c0_1, %c0_2] : memref<32x384xf32, #tpu.memory_space<vmem>>, vector<32x96xf32>
    %c0_3 = arith.constant 0 : index
    %c128 = arith.constant 128 : index
    %2 = vector.load %arg2[%c0_3, %c128] : memref<32x384xf32, #tpu.memory_space<vmem>>, vector<32x32xf32>
    %c0_4 = arith.constant 0 : index
    %c256 = arith.constant 256 : index
    %3 = vector.load %arg2[%c0_4, %c256] : memref<32x384xf32, #tpu.memory_space<vmem>>, vector<32x64xf32>
    %c0_5 = arith.constant 0 : index
    %c0_6 = arith.constant 0 : index
    %4 = vector.load %arg3[%c0_5, %c0_6] : memref<64x32xf32, #tpu.memory_space<vmem>>, vector<64x32xf32>
    %c0_7 = arith.constant 0 : index
    %c0_8 = arith.constant 0 : index
    %5 = vector.load %arg4[%c0_7, %c0_8] : memref<1x512xf32, #tpu.memory_space<vmem>>, vector<1x96xf32>
    %c0_9 = arith.constant 0 : index
    %c128_10 = arith.constant 128 : index
    %6 = vector.load %arg4[%c0_9, %c128_10] : memref<1x512xf32, #tpu.memory_space<vmem>>, vector<1x64xf32>
    %c0_11 = arith.constant 0 : index
    %c256_12 = arith.constant 256 : index
    %7 = vector.load %arg4[%c0_11, %c256_12] : memref<1x512xf32, #tpu.memory_space<vmem>>, vector<1x32xf32>
    %c0_13 = arith.constant 0 : index
    %c384 = arith.constant 384 : index
    %8 = vector.load %arg4[%c0_13, %c384] : memref<1x512xf32, #tpu.memory_space<vmem>>, vector<1x32xf32>
    %cst = arith.constant dense<0.000000e+00> : vector<16xf32>
    %9 = vector.multi_reduction <add>, %0, %cst [1] : vector<16x32xf32> to vector<16xf32>
    %10 = vector.shape_cast %9 : vector<16xf32> to vector<16x1xf32>
    %cst_14 = arith.constant 3.200000e+01 : f32
    %11 = vector.broadcast %cst_14 : f32 to vector<16x1xf32>
    %12 = arith.divf %10, %11 : vector<16x1xf32>
    %13 = vector.broadcast %12 : vector<16x1xf32> to vector<16x32xf32>
    %14 = arith.subf %0, %13 : vector<16x32xf32>
    %15 = arith.mulf %14, %14 : vector<16x32xf32>
    %cst_15 = arith.constant dense<0.000000e+00> : vector<16xf32>
    %16 = vector.multi_reduction <add>, %15, %cst_15 [1] : vector<16x32xf32> to vector<16xf32>
    %17 = vector.shape_cast %16 : vector<16xf32> to vector<16x1xf32>
    %cst_16 = arith.constant 3.200000e+01 : f32
    %18 = vector.broadcast %cst_16 : f32 to vector<16x1xf32>
    %19 = arith.divf %17, %18 : vector<16x1xf32>
    %20 = vector.broadcast %12 : vector<16x1xf32> to vector<16x32xf32>
    %21 = arith.subf %0, %20 : vector<16x32xf32>
    %cst_17 = arith.constant 9.99999997E-7 : f32
    %22 = vector.broadcast %cst_17 : f32 to vector<16x1xf32>
    %23 = arith.addf %19, %22 : vector<16x1xf32>
    %24 = math.rsqrt %23 : vector<16x1xf32>
    %25 = vector.broadcast %24 : vector<16x1xf32> to vector<16x32xf32>
    %26 = arith.mulf %21, %25 : vector<16x32xf32>
    %cst_18 = arith.constant dense<0.000000e+00> : vector<16x96xf32>
    %27 = tpu.matmul %26, %1, %cst_18 {dimension_numbers = #tpu.dot_dimension_numbers<[1], [0], [0], [1], [0, 0, 1, 1], [], []>} : vector<16x32xf32>, vector<32x96xf32>, vector<16x96xf32> -> vector<16x96xf32>
    %28 = vector.broadcast %5 : vector<1x96xf32> to vector<16x96xf32>
    %29 = arith.addf %27, %28 : vector<16x96xf32>
    %30 = vector.shape_cast %29 : vector<16x96xf32> to vector<2x8x96xf32>
    %c0_19 = arith.constant 0 : index
    %c0_20 = arith.constant 0 : index
    %c0_21 = arith.constant 0 : index
    %31 = vector.load %arg1[%c0_19, %c0_20, %c0_21] : memref<2x1x8xi32, #tpu.memory_space<vmem>>, vector<2x1x8xi32>
    %c0_i32 = arith.constant 0 : i32
    %32 = vector.broadcast %c0_i32 : i32 to vector<2x1x8xi32>
    %33 = arith.cmpi ne, %31, %32 : vector<2x1x8xi32>
    %cst_22 = arith.constant -9.99999984E+17 : f32
    %cst_23 = arith.constant 0.000000e+00 : f32
    %34 = vector.broadcast %cst_22 : f32 to vector<2x1x8xf32>
    %35 = vector.broadcast %cst_23 : f32 to vector<2x1x8xf32>
    %36 = arith.select %33, %34, %35 : vector<2x1x8xi1>, vector<2x1x8xf32>
    %37 = vector.extract_strided_slice %30 {offsets = [0, 0, 0], sizes = [2, 8, 8], strides = [1, 1, 1]} : vector<2x8x96xf32> to vector<2x8x8xf32>
    %38 = vector.extract_strided_slice %30 {offsets = [0, 0, 32], sizes = [2, 8, 8], strides = [1, 1, 1]} : vector<2x8x96xf32> to vector<2x8x8xf32>
    %39 = vector.extract_strided_slice %30 {offsets = [0, 0, 64], sizes = [2, 8, 8], strides = [1, 1, 1]} : vector<2x8x96xf32> to vector<2x8x8xf32>
    "tpu.trace_start"() <{level = 10 : i32, message = "bqd,bkd->bqk"}> : () -> ()
    %cst_24 = arith.constant dense<0.000000e+00> : vector<2x8x8xf32>
    %40 = tpu.matmul %37, %38, %cst_24 {dimension_numbers = #tpu.dot_dimension_numbers<[2], [2], [1], [1], [0, 0, 0, 1, 1, 1], [0], [0]>} : vector<2x8x8xf32>, vector<2x8x8xf32>, vector<2x8x8xf32> -> vector<2x8x8xf32>
    "tpu.trace_stop"() : () -> ()
    %41 = vector.broadcast %36 : vector<2x1x8xf32> to vector<2x8x8xf32>
    %42 = arith.addf %40, %41 : vector<2x8x8xf32>
    %cst_25 = arith.constant dense<0xFF800000> : vector<2x8xf32>
    %43 = vector.multi_reduction <maximumf>, %42, %cst_25 [2] : vector<2x8x8xf32> to vector<2x8xf32>
    %44 = vector.shape_cast %43 : vector<2x8xf32> to vector<2x8x1xf32>
    %45 = vector.broadcast %44 : vector<2x8x1xf32> to vector<2x8x8xf32>
    %46 = arith.subf %42, %45 : vector<2x8x8xf32>
    %47 = math.exp %46 : vector<2x8x8xf32>
    %cst_26 = arith.constant dense<0.000000e+00> : vector<2x8xf32>
    %48 = vector.multi_reduction <add>, %47, %cst_26 [2] : vector<2x8x8xf32> to vector<2x8xf32>
    %49 = vector.shape_cast %48 : vector<2x8xf32> to vector<2x8x1xf32>
    %50 = tpu.reciprocal %49 : vector<2x8x1xf32> -> vector<2x8x1xf32>
    %51 = vector.broadcast %50 : vector<2x8x1xf32> to vector<2x8x8xf32>
    %52 = arith.mulf %47, %51 : vector<2x8x8xf32>
    "tpu.trace_start"() <{level = 10 : i32, message = "bqk,bkd->bqd"}> : () -> ()
    %cst_27 = arith.constant dense<0.000000e+00> : vector<2x8x8xf32>
    %53 = tpu.matmul %52, %39, %cst_27 {dimension_numbers = #tpu.dot_dimension_numbers<[2], [1], [1], [2], [0, 0, 0, 1, 1, 2], [0], [0]>} : vector<2x8x8xf32>, vector<2x8x8xf32>, vector<2x8x8xf32> -> vector<2x8x8xf32>
    "tpu.trace_stop"() : () -> ()
    %54 = vector.extract_strided_slice %30 {offsets = [0, 0, 8], sizes = [2, 8, 8], strides = [1, 1, 1]} : vector<2x8x96xf32> to vector<2x8x8xf32>
    %55 = vector.extract_strided_slice %30 {offsets = [0, 0, 40], sizes = [2, 8, 8], strides = [1, 1, 1]} : vector<2x8x96xf32> to vector<2x8x8xf32>
    %56 = vector.extract_strided_slice %30 {offsets = [0, 0, 72], sizes = [2, 8, 8], strides = [1, 1, 1]} : vector<2x8x96xf32> to vector<2x8x8xf32>
    "tpu.trace_start"() <{level = 10 : i32, message = "bqd,bkd->bqk"}> : () -> ()
    %cst_28 = arith.constant dense<0.000000e+00> : vector<2x8x8xf32>
    %57 = tpu.matmul %54, %55, %cst_28 {dimension_numbers = #tpu.dot_dimension_numbers<[2], [2], [1], [1], [0, 0, 0, 1, 1, 1], [0], [0]>} : vector<2x8x8xf32>, vector<2x8x8xf32>, vector<2x8x8xf32> -> vector<2x8x8xf32>
    "tpu.trace_stop"() : () -> ()
    %58 = vector.broadcast %36 : vector<2x1x8xf32> to vector<2x8x8xf32>
    %59 = arith.addf %57, %58 : vector<2x8x8xf32>
    %cst_29 = arith.constant dense<0xFF800000> : vector<2x8xf32>
    %60 = vector.multi_reduction <maximumf>, %59, %cst_29 [2] : vector<2x8x8xf32> to vector<2x8xf32>
    %61 = vector.shape_cast %60 : vector<2x8xf32> to vector<2x8x1xf32>
    %62 = vector.broadcast %61 : vector<2x8x1xf32> to vector<2x8x8xf32>
    %63 = arith.subf %59, %62 : vector<2x8x8xf32>
    %64 = math.exp %63 : vector<2x8x8xf32>
    %cst_30 = arith.constant dense<0.000000e+00> : vector<2x8xf32>
    %65 = vector.multi_reduction <add>, %64, %cst_30 [2] : vector<2x8x8xf32> to vector<2x8xf32>
    %66 = vector.shape_cast %65 : vector<2x8xf32> to vector<2x8x1xf32>
    %67 = tpu.reciprocal %66 : vector<2x8x1xf32> -> vector<2x8x1xf32>
    %68 = vector.broadcast %67 : vector<2x8x1xf32> to vector<2x8x8xf32>
    %69 = arith.mulf %64, %68 : vector<2x8x8xf32>
    "tpu.trace_start"() <{level = 10 : i32, message = "bqk,bkd->bqd"}> : () -> ()
    %cst_31 = arith.constant dense<0.000000e+00> : vector<2x8x8xf32>
    %70 = tpu.matmul %69, %56, %cst_31 {dimension_numbers = #tpu.dot_dimension_numbers<[2], [1], [1], [2], [0, 0, 0, 1, 1, 2], [0], [0]>} : vector<2x8x8xf32>, vector<2x8x8xf32>, vector<2x8x8xf32> -> vector<2x8x8xf32>
    "tpu.trace_stop"() : () -> ()
    %71 = vector.extract_strided_slice %30 {offsets = [0, 0, 16], sizes = [2, 8, 8], strides = [1, 1, 1]} : vector<2x8x96xf32> to vector<2x8x8xf32>
    %72 = vector.extract_strided_slice %30 {offsets = [0, 0, 48], sizes = [2, 8, 8], strides = [1, 1, 1]} : vector<2x8x96xf32> to vector<2x8x8xf32>
    %73 = vector.extract_strided_slice %30 {offsets = [0, 0, 80], sizes = [2, 8, 8], strides = [1, 1, 1]} : vector<2x8x96xf32> to vector<2x8x8xf32>
    "tpu.trace_start"() <{level = 10 : i32, message = "bqd,bkd->bqk"}> : () -> ()
    %cst_32 = arith.constant dense<0.000000e+00> : vector<2x8x8xf32>
    %74 = tpu.matmul %71, %72, %cst_32 {dimension_numbers = #tpu.dot_dimension_numbers<[2], [2], [1], [1], [0, 0, 0, 1, 1, 1], [0], [0]>} : vector<2x8x8xf32>, vector<2x8x8xf32>, vector<2x8x8xf32> -> vector<2x8x8xf32>
    "tpu.trace_stop"() : () -> ()
    %75 = vector.broadcast %36 : vector<2x1x8xf32> to vector<2x8x8xf32>
    %76 = arith.addf %74, %75 : vector<2x8x8xf32>
    %cst_33 = arith.constant dense<0xFF800000> : vector<2x8xf32>
    %77 = vector.multi_reduction <maximumf>, %76, %cst_33 [2] : vector<2x8x8xf32> to vector<2x8xf32>
    %78 = vector.shape_cast %77 : vector<2x8xf32> to vector<2x8x1xf32>
    %79 = vector.broadcast %78 : vector<2x8x1xf32> to vector<2x8x8xf32>
    %80 = arith.subf %76, %79 : vector<2x8x8xf32>
    %81 = math.exp %80 : vector<2x8x8xf32>
    %cst_34 = arith.constant dense<0.000000e+00> : vector<2x8xf32>
    %82 = vector.multi_reduction <add>, %81, %cst_34 [2] : vector<2x8x8xf32> to vector<2x8xf32>
    %83 = vector.shape_cast %82 : vector<2x8xf32> to vector<2x8x1xf32>
    %84 = tpu.reciprocal %83 : vector<2x8x1xf32> -> vector<2x8x1xf32>
    %85 = vector.broadcast %84 : vector<2x8x1xf32> to vector<2x8x8xf32>
    %86 = arith.mulf %81, %85 : vector<2x8x8xf32>
    "tpu.trace_start"() <{level = 10 : i32, message = "bqk,bkd->bqd"}> : () -> ()
    %cst_35 = arith.constant dense<0.000000e+00> : vector<2x8x8xf32>
    %87 = tpu.matmul %86, %73, %cst_35 {dimension_numbers = #tpu.dot_dimension_numbers<[2], [1], [1], [2], [0, 0, 0, 1, 1, 2], [0], [0]>} : vector<2x8x8xf32>, vector<2x8x8xf32>, vector<2x8x8xf32> -> vector<2x8x8xf32>
    "tpu.trace_stop"() : () -> ()
    %88 = vector.extract_strided_slice %30 {offsets = [0, 0, 24], sizes = [2, 8, 8], strides = [1, 1, 1]} : vector<2x8x96xf32> to vector<2x8x8xf32>
    %89 = vector.extract_strided_slice %30 {offsets = [0, 0, 56], sizes = [2, 8, 8], strides = [1, 1, 1]} : vector<2x8x96xf32> to vector<2x8x8xf32>
    %90 = vector.extract_strided_slice %30 {offsets = [0, 0, 88], sizes = [2, 8, 8], strides = [1, 1, 1]} : vector<2x8x96xf32> to vector<2x8x8xf32>
    "tpu.trace_start"() <{level = 10 : i32, message = "bqd,bkd->bqk"}> : () -> ()
    %cst_36 = arith.constant dense<0.000000e+00> : vector<2x8x8xf32>
    %91 = tpu.matmul %88, %89, %cst_36 {dimension_numbers = #tpu.dot_dimension_numbers<[2], [2], [1], [1], [0, 0, 0, 1, 1, 1], [0], [0]>} : vector<2x8x8xf32>, vector<2x8x8xf32>, vector<2x8x8xf32> -> vector<2x8x8xf32>
    "tpu.trace_stop"() : () -> ()
    %92 = vector.broadcast %36 : vector<2x1x8xf32> to vector<2x8x8xf32>
    %93 = arith.addf %91, %92 : vector<2x8x8xf32>
    %cst_37 = arith.constant dense<0xFF800000> : vector<2x8xf32>
    %94 = vector.multi_reduction <maximumf>, %93, %cst_37 [2] : vector<2x8x8xf32> to vector<2x8xf32>
    %95 = vector.shape_cast %94 : vector<2x8xf32> to vector<2x8x1xf32>
    %96 = vector.broadcast %95 : vector<2x8x1xf32> to vector<2x8x8xf32>
    %97 = arith.subf %93, %96 : vector<2x8x8xf32>
    %98 = math.exp %97 : vector<2x8x8xf32>
    %cst_38 = arith.constant dense<0.000000e+00> : vector<2x8xf32>
    %99 = vector.multi_reduction <add>, %98, %cst_38 [2] : vector<2x8x8xf32> to vector<2x8xf32>
    %100 = vector.shape_cast %99 : vector<2x8xf32> to vector<2x8x1xf32>
    %101 = tpu.reciprocal %100 : vector<2x8x1xf32> -> vector<2x8x1xf32>
    %102 = vector.broadcast %101 : vector<2x8x1xf32> to vector<2x8x8xf32>
    %103 = arith.mulf %98, %102 : vector<2x8x8xf32>
    "tpu.trace_start"() <{level = 10 : i32, message = "bqk,bkd->bqd"}> : () -> ()
    %cst_39 = arith.constant dense<0.000000e+00> : vector<2x8x8xf32>
    %104 = tpu.matmul %103, %90, %cst_39 {dimension_numbers = #tpu.dot_dimension_numbers<[2], [1], [1], [2], [0, 0, 0, 1, 1, 2], [0], [0]>} : vector<2x8x8xf32>, vector<2x8x8xf32>, vector<2x8x8xf32> -> vector<2x8x8xf32>
    "tpu.trace_stop"() : () -> ()
    %105 = tpu.concatenate %53, %70, %87, %104 in 2 : vector<2x8x8xf32>, vector<2x8x8xf32>, vector<2x8x8xf32>, vector<2x8x8xf32> -> vector<2x8x32xf32>
    %106 = vector.shape_cast %105 : vector<2x8x32xf32> to vector<16x32xf32>
    %cst_40 = arith.constant dense<0.000000e+00> : vector<16x32xf32>
    %107 = tpu.matmul %106, %2, %cst_40 {dimension_numbers = #tpu.dot_dimension_numbers<[1], [0], [0], [1], [0, 0, 1, 1], [], []>} : vector<16x32xf32>, vector<32x32xf32>, vector<16x32xf32> -> vector<16x32xf32>
    %108 = vector.broadcast %7 : vector<1x32xf32> to vector<16x32xf32>
    %109 = arith.addf %107, %108 : vector<16x32xf32>
    %110 = arith.addf %109, %0 : vector<16x32xf32>
    %cst_41 = arith.constant dense<0.000000e+00> : vector<16xf32>
    %111 = vector.multi_reduction <add>, %110, %cst_41 [1] : vector<16x32xf32> to vector<16xf32>
    %112 = vector.shape_cast %111 : vector<16xf32> to vector<16x1xf32>
    %cst_42 = arith.constant 3.200000e+01 : f32
    %113 = vector.broadcast %cst_42 : f32 to vector<16x1xf32>
    %114 = arith.divf %112, %113 : vector<16x1xf32>
    %115 = vector.broadcast %114 : vector<16x1xf32> to vector<16x32xf32>
    %116 = arith.subf %110, %115 : vector<16x32xf32>
    %117 = arith.mulf %116, %116 : vector<16x32xf32>
    %cst_43 = arith.constant dense<0.000000e+00> : vector<16xf32>
    %118 = vector.multi_reduction <add>, %117, %cst_43 [1] : vector<16x32xf32> to vector<16xf32>
    %119 = vector.shape_cast %118 : vector<16xf32> to vector<16x1xf32>
    %cst_44 = arith.constant 3.200000e+01 : f32
    %120 = vector.broadcast %cst_44 : f32 to vector<16x1xf32>
    %121 = arith.divf %119, %120 : vector<16x1xf32>
    %122 = vector.broadcast %114 : vector<16x1xf32> to vector<16x32xf32>
    %123 = arith.subf %110, %122 : vector<16x32xf32>
    %cst_45 = arith.constant 9.99999997E-7 : f32
    %124 = vector.broadcast %cst_45 : f32 to vector<16x1xf32>
    %125 = arith.addf %121, %124 : vector<16x1xf32>
    %126 = math.rsqrt %125 : vector<16x1xf32>
    %127 = vector.broadcast %126 : vector<16x1xf32> to vector<16x32xf32>
    %128 = arith.mulf %123, %127 : vector<16x32xf32>
    %cst_46 = arith.constant dense<0.000000e+00> : vector<16x64xf32>
    %129 = tpu.matmul %128, %3, %cst_46 {dimension_numbers = #tpu.dot_dimension_numbers<[1], [0], [0], [1], [0, 0, 1, 1], [], []>} : vector<16x32xf32>, vector<32x64xf32>, vector<16x64xf32> -> vector<16x64xf32>
    %130 = vector.broadcast %6 : vector<1x64xf32> to vector<16x64xf32>
    %131 = arith.addf %129, %130 : vector<16x64xf32>
    %cst_47 = arith.constant 0.000000e+00 : f32
    %132 = vector.broadcast %cst_47 : f32 to vector<16x64xf32>
    %133 = arith.maximumf %131, %132 : vector<16x64xf32>
    %cst_48 = arith.constant dense<0.000000e+00> : vector<16x32xf32>
    %134 = tpu.matmul %133, %4, %cst_48 {dimension_numbers = #tpu.dot_dimension_numbers<[1], [0], [0], [1], [0, 0, 1, 1], [], []>} : vector<16x64xf32>, vector<64x32xf32>, vector<16x32xf32> -> vector<16x32xf32>
    %135 = vector.broadcast %8 : vector<1x32xf32> to vector<16x32xf32>
    %136 = arith.addf %134, %135 : vector<16x32xf32>
    %137 = arith.addf %136, %110 : vector<16x32xf32>
    %c0_49 = arith.constant 0 : index
    %c0_50 = arith.constant 0 : index
    %138 = vector.load %arg5[%c0_49, %c0_50] : memref<16x32xf32, #tpu.memory_space<vmem>>, vector<16x32xf32>
    tpu.vector_store %arg5[%c0_49, %c0_50], %137 {strides = array<i32>} : memref<16x32xf32, #tpu.memory_space<vmem>>, vector<16x32xf32>,
    return
  }
}

</mosaic_0001>

<llo_original>
// kernel: tpu_custom_call.1
$region0: #{tpu_custom_call.1}
  #allocation0 [shape = 'u32[]', space=smem, size = 0x4, offset = 0x4, fixed_abs, tag = 'smem constant byte address 0x4 - core index']
  #allocation1 [shape = 'u32[144,128]{1,0:T(1,128)}', space=vmem, size = 0x12000, scoped, tag = 'internal scratch']
  %s0 = inlined_call_operand.hbm [shape: f32[16,32], index: 0, kind: input, shape index: {}]
  %s1 = inlined_call_operand.vmem [shape: s32[2,1,8], index: 1, kind: input, shape index: {}]
  %s2 = inlined_call_operand.vmem [shape: f32[32,384], index: 2, kind: input, shape index: {}]
  %s3 = inlined_call_operand.vmem [shape: f32[64,32], index: 3, kind: input, shape index: {}]
  %s4 = inlined_call_operand.vmem [shape: f32[1,512], index: 4, kind: input, shape index: {}]
  %s5 = inlined_call_operand.hbm [shape: f32[16,32], index: 5, kind: output, shape index: {}]
  %s6 = sld [smem:[#allocation0]]
  $region34: #{tpu_custom_call.1} parent=0
    _
  %s8 = ssub.s32 1, %s6
  %s9 = scalar_select 0, %s8, %s6
  $region1: #{tpu_custom_call.1} parent=0
    #allocation2 [shape = 'u8[8192]{0}', space=vmem, size = 0x2000, scoped, tag = 'input window, operand 0, single buffered']
    #allocation3 [shape = 's32[1]{0}', space=sflag, size = 0x4, scoped, tag = 'scoped memory for tpu_custom_call.1']
    #allocation4 [shape = 's32[1]{0}', space=sflag, size = 0x4, scoped, tag = 'scoped memory for tpu_custom_call.1']
    #allocation5 [shape = 'u8[8192]{0}', space=vmem, size = 0x2000, scoped, tag = 'output window, operand 0, single buffered']
    %10 = vsyncpa [#allocation3], 0
    %11 = vsyncpa [#allocation4], 0
    // Predicated region
    $region2: #{tpu_custom_call.1} parent=1 // pred_check
      _
    $region3: #{tpu_custom_call.1} parent=1 // pred_check_branch
      %13 = sbr.rel (0) target = $region5
    $region4: #{tpu_custom_call.1} parent=1 // pred_region
      %s15 = ssub.s32 256, 256
      %16 = vsyncadd [#allocation3], %s15
      %s17 = sshll.u32 [#allocation2], 4
      %s18 = int_to_ptr.vmem [resolvable:$true] %s17
      %23 = dma.hbm_to_vmem [thread:$0]  %s0, 256, %s18, [#allocation3], 128, 128, 8
    $region5: #{tpu_custom_call.1} parent=1 // pred_fallthru
      _
    // Predicated region
    $region6: #{tpu_custom_call.1} parent=1 // pred_check
      _
    $region7: #{tpu_custom_call.1} parent=1 // pred_check_branch
      %25 = sbr.rel (0) target = $region9
    $region8: #{tpu_custom_call.1} parent=1 // pred_region
      _
    $region9: #{tpu_custom_call.1} parent=1 // pred_fallthru
      _
    // Predicated region
    $region10: #{tpu_custom_call.1} parent=1 // pred_check
      _
    $region11: #{tpu_custom_call.1} parent=1 // pred_check_branch
      %27 = sbr.rel (0) target = $region13
    $region12: #{tpu_custom_call.1} parent=1 // pred_region
      _
    $region13: #{tpu_custom_call.1} parent=1 // pred_fallthru
      _
    // Predicated region
    $region14: #{tpu_custom_call.1} parent=1 // pred_check
      _
    $region15: #{tpu_custom_call.1} parent=1 // pred_check_branch
      %29 = sbr.rel (0) target = $region17
    $region16: #{tpu_custom_call.1} parent=1 // pred_region
      _
    $region17: #{tpu_custom_call.1} parent=1 // pred_fallthru
      _
    // Predicated region
    $region18: #{tpu_custom_call.1} parent=1 // pred_check
      _
    $region19: #{tpu_custom_call.1} parent=1 // pred_check_branch
      %31 = sbr.rel (0) target = $region21
    $region20: #{tpu_custom_call.1} parent=1 // pred_region
      _
    $region21: #{tpu_custom_call.1} parent=1 // pred_fallthru
      _
    // Predicated region
    $region22: #{tpu_custom_call.1} parent=1 // pred_check
      _
    $region23: #{tpu_custom_call.1} parent=1 // pred_check_branch
      %33 = sbr.rel (0) target = $region25
    $region24: #{tpu_custom_call.1} parent=1 // pred_region
      %34 = dma.done [#allocation3], 256
    $region25: #{tpu_custom_call.1} parent=1 // pred_fallthru
      _
    %v35 = vld [vmem:[#allocation2] sm:$0xff]
    %v36 = vld [vmem:[#allocation2 + $0x8] sm:$0xff]
    %v37 = vld [vmem:[%s2] sm:$0xff]
    %v38 = vld [vmem:[%s2 + $0x18] sm:$0xff]
    %v39 = vld [vmem:[%s2 + $0x30] sm:$0xff]
    %v40 = vld [vmem:[%s2 + $0x48] sm:$0xff]
    %v41 = vld [vmem:[%s2 + $0x8] sm:$0xff]
    %v42 = vld [vmem:[%s2 + $0x20] sm:$0xff]
    %v43 = vld [vmem:[%s2 + $0x38] sm:$0xff]
    %v44 = vld [vmem:[%s2 + $0x50] sm:$0xff]
    %v45 = vld [vmem:[%s2 + $0x10] sm:$0xff]
    %v46 = vld [vmem:[%s2 + $0x28] sm:$0xff]
    %v47 = vld [vmem:[%s2 + $0x40] sm:$0xff]
    %v48 = vld [vmem:[%s2 + $0x58] sm:$0xff]
    %v49 = vld [vmem:[%s3] sm:$0xff]
    %v50 = vld [vmem:[%s3 + $0x8] sm:$0xff]
    %v51 = vld [vmem:[%s3 + $0x10] sm:$0xff]
    %v52 = vld [vmem:[%s3 + $0x18] sm:$0xff]
    %v53 = vld [vmem:[%s3 + $0x20] sm:$0xff]
    %v54 = vld [vmem:[%s3 + $0x28] sm:$0xff]
    %v55 = vld [vmem:[%s3 + $0x30] sm:$0xff]
    %v56 = vld [vmem:[%s3 + $0x38] sm:$0xff]
    %v57 = vld [vmem:[%s4] sm:$0x1]
    %v58 = vld [vmem:[%s4 + $0x1] sm:$0x1]
    %v59 = vld [vmem:[%s4 + $0x2] sm:$0x1]
    %v60 = vld [vmem:[%s4 + $0x3] sm:$0x1]
    %vm61 = vcmask 261120
    %v62 = vsel %vm61, %v35, 0.0
    %63 = vadd.xlane.f32.xlu0 %v62
    %v64 = vpop.xlane.xlu0 %63
    %v65 = vsel %vm61, %v36, 0.0
    %66 = vadd.xlane.f32.xlu0 %v65
    %v67 = vpop.xlane.xlu0 %66
    %v68 = vrcp.pop 32.0
    %v69 = vmul.f32 %v64, %v68
    %v70 = vmul.f32 %v67, %v68
    %v71 = vsub.f32 %v35, %v69
    %v72 = vsub.f32 %v36, %v70
    %v73 = vmul.f32 %v71, %v71
    %v74 = vmul.f32 %v72, %v72
    %v75 = vsel %vm61, %v73, 0.0
    %76 = vadd.xlane.f32.xlu0 %v75
    %v77 = vpop.xlane.xlu0 %76
    %v78 = vsel %vm61, %v74, 0.0
    %79 = vadd.xlane.f32.xlu0 %v78
    %v80 = vpop.xlane.xlu0 %79
    %v81 = vmul.f32 %v77, %v68
    %v82 = vmul.f32 %v80, %v68
    %v83 = vadd.f32 %v81, 1e-06
    %v84 = vadd.f32 %v82, 1e-06
    %v85 = vrsqrt.pop %v83
    %v86 = vrsqrt.pop %v84
    %v87 = vmul.f32 %v71, %v85
    %v88 = vmul.f32 %v72, %v86
    %v90 = vlaneseq
    %v91 = vshrl.u32 %v90, 7
    %v92 = vsub.s32 0, %v91
    %v93 = vrot.slane %v57, %v92
    %v96 = vsel %vm61, %v87, 0
    %v99 = vsel %vm61, %v88, 0
    %101 = vmatprep.subr.mxu0 0.0
    %102 = vmatpush1.msra.mxu0 %v37
    %103 = vmatprep.subr.mxu0 0.0
    %104 = vmatpush1.msra.mxu0 %v38
    %105 = vmatprep.subr.mxu0 0.0
    %106 = vmatpush1.msra.mxu0 %v39
    %107 = vmatprep.subr.mxu0 0.0
    %108 = vmatpush1.msra.mxu0 %v40
    %109 = vmatprep.subr.mxu0 0.0
    %110 = vmatpush1.msra.mxu0 0.0
    %111 = vmatprep.subr.mxu0 0.0
    %112 = vmatpush1.msra.mxu0 0.0
    %113 = vmatprep.subr.mxu0 0.0
    %114 = vmatpush1.msra.mxu0 0.0
    %115 = vmatprep.subr.mxu0 0.0
    %116 = vmatpush1.msra.mxu0 0.0
    %117 = vmatprep.subr.mxu0 0.0
    %118 = vmatpush1.msra.mxu0 0.0
    %119 = vmatprep.subr.mxu0 0.0
    %120 = vmatpush1.msra.mxu0 0.0
    %121 = vmatprep.subr.mxu0 0.0
    %122 = vmatpush1.msra.mxu0 0.0
    %123 = vmatprep.subr.mxu0 0.0
    %124 = vmatpush1.msra.mxu0 0.0
    %125 = vmatprep.subr.mxu0 0.0
    %126 = vmatpush1.msra.mxu0 0.0
    %127 = vmatprep.subr.mxu0 0.0
    %128 = vmatpush1.msra.mxu0 0.0
    %129 = vmatprep.subr.mxu0 0.0
    %130 = vmatpush1.msra.mxu0 0.0
    %131 = vmatprep.subr.mxu0 0.0
    %132 = vmatpush1.msra.mxu0 0.0
    %133 = vmatprep.subr.mxu0 0.0
    %134 = vmatpush1.msra.mxu0 0.0
    %135 = vmatprep.subr.mxu0 0.0
    %136 = vmatpush1.msra.mxu0 0.0
    %137 = vmatprep.subr.mxu0 0.0
    %138 = vmatpush1.msra.mxu0 0.0
    %139 = vmatprep.subr.mxu0 0.0
    %140 = vmatpush1.msra.mxu0 0.0
    %141 = vmatprep.subr.mxu0 0.0
    %142 = vmatpush1.msra.mxu0 0.0
    %143 = vmatprep.subr.mxu0 0.0
    %144 = vmatpush1.msra.mxu0 0.0
    %145 = vmatprep.subr.mxu0 0.0
    %146 = vmatpush1.msra.mxu0 0.0
    %147 = vmatprep.subr.mxu0 0.0
    %148 = vmatpush1.msra.mxu0 0.0
    %149 = vmatprep.subr.mxu0 0.0
    %150 = vmatpush1.msra.mxu0 0.0
    %151 = vmatprep.subr.mxu0 0.0
    %152 = vmatpush1.msra.mxu0 0.0
    %153 = vmatprep.subr.mxu0 0.0
    %154 = vmatpush1.msra.mxu0 0.0
    %155 = vmatprep.subr.mxu0 0.0
    %156 = vmatpush1.msra.mxu0 0.0
    %157 = vmatprep.subr.mxu0 0.0
    %158 = vmatpush1.msra.mxu0 0.0
    %159 = vmatprep.subr.mxu0 0.0
    %160 = vmatpush1.msra.mxu0 0.0
    %161 = vmatprep.subr.mxu0 0.0
    %162 = vmatpush1.msra.mxu0 0.0
    %163 = vmatprep.subr.mxu0 0.0
    %164 = vmatpush1.msra.mxu0 0.0
    %165 = vmatprep.mubr.f32.mxu0 0.0
    %166 = vmatmul.mubr.f32.gmra.mrb[0].mxu0 %v96
    %v167 = vpop.f32.mrb[0].mxu0
    %v168 = vadd.f32 %v93, %v167
    %v169 = vpop.f32.mrb[0].mxu0
    %170 = vmatprep.mubr.f32.mxu0 0.0
    %171 = vmatmul.mubr.f32.gmra.mrb[0].mxu0 %v99
    %v172 = vpop.f32.mrb[0].mxu0
    %v173 = vadd.f32 %v93, %v172
    %v174 = vpop.f32.mrb[0].mxu0
    %175 = vdwg.mxu0
    %v176 = vld [vmem:[%s1] sm:$0x1]
    %v177 = vld [vmem:[%s1 + $0x1] sm:$0x1]
    %vm178 = vcmp.ne.s32.totalorder %v176, 0
    %vm179 = vcmp.ne.s32.totalorder %v177, 0
    %v180 = vsel %vm178, -1e+18, 0.0
    %v181 = vsel %vm179, -1e+18, 0.0
    %v184 = vlaneseq
    %v185 = vshrl.u32 %v184, 7
    %v186 = vsub.s32 0, %v185
    %v187 = vrot.slane %v180, %v186
    %v188 = vlaneseq
    %v189 = vshrl.u32 %v188, 7
    %v190 = vsub.s32 0, %v189
    %v191 = vrot.slane %v181, %v190
    %195 = vrot.lane.b32.xlu0 %v168, 96
    %v196 = vpop.permute.xlu0 %195
    %vm197 = vcmask 64512
    %v198 = vsel %vm197, %v168, 0
    %v200 = vsel %vm197, %v196, 0
    %202 = vmatprep.subr.mxu0 0.0
    %203 = vmatpush1.xpose.msra.mxu0 %v200
    %204 = vmatprep.subr.mxu0 0.0
    %205 = vmatpush1.xpose.msra.mxu0 0.0
    %206 = vmatprep.subr.mxu0 0.0
    %207 = vmatpush1.xpose.msra.mxu0 0.0
    %208 = vmatprep.subr.mxu0 0.0
    %209 = vmatpush1.xpose.msra.mxu0 0.0
    %210 = vmatprep.subr.mxu0 0.0
    %211 = vmatpush1.xpose.msra.mxu0 0.0
    %212 = vmatprep.subr.mxu0 0.0
    %213 = vmatpush1.xpose.msra.mxu0 0.0
    %214 = vmatprep.subr.mxu0 0.0
    %215 = vmatpush1.xpose.msra.mxu0 0.0
    %216 = vmatprep.subr.mxu0 0.0
    %217 = vmatpush1.xpose.msra.mxu0 0.0
    %218 = vmatprep.subr.mxu0 0.0
    %219 = vmatpush1.xpose.msra.mxu0 0.0
    %220 = vmatprep.subr.mxu0 0.0
    %221 = vmatpush1.xpose.msra.mxu0 0.0
    %222 = vmatprep.subr.mxu0 0.0
    %223 = vmatpush1.xpose.msra.mxu0 0.0
    %224 = vmatprep.subr.mxu0 0.0
    %225 = vmatpush1.xpose.msra.mxu0 0.0
    %226 = vmatprep.subr.mxu0 0.0
    %227 = vmatpush1.xpose.msra.mxu0 0.0
    %228 = vmatprep.subr.mxu0 0.0
    %229 = vmatpush1.xpose.msra.mxu0 0.0
    %230 = vmatprep.subr.mxu0 0.0
    %231 = vmatpush1.xpose.msra.mxu0 0.0
    %232 = vmatprep.subr.mxu0 0.0
    %233 = vmatpush1.xpose.msra.mxu0 0.0
    %234 = vmatprep.subr.mxu0 0.0
    %235 = vmatpush1.xpose.msra.mxu0 0.0
    %236 = vmatprep.subr.mxu0 0.0
    %237 = vmatpush1.xpose.msra.mxu0 0.0
    %238 = vmatprep.subr.mxu0 0.0
    %239 = vmatpush1.xpose.msra.mxu0 0.0
    %240 = vmatprep.subr.mxu0 0.0
    %241 = vmatpush1.xpose.msra.mxu0 0.0
    %242 = vmatprep.subr.mxu0 0.0
    %243 = vmatpush1.xpose.msra.mxu0 0.0
    %244 = vmatprep.subr.mxu0 0.0
    %245 = vmatpush1.xpose.msra.mxu0 0.0
    %246 = vmatprep.subr.mxu0 0.0
    %247 = vmatpush1.xpose.msra.mxu0 0.0
    %248 = vmatprep.subr.mxu0 0.0
    %249 = vmatpush1.xpose.msra.mxu0 0.0
    %250 = vmatprep.subr.mxu0 0.0
    %251 = vmatpush1.xpose.msra.mxu0 0.0
    %252 = vmatprep.subr.mxu0 0.0
    %253 = vmatpush1.xpose.msra.mxu0 0.0
    %254 = vmatprep.subr.mxu0 0.0
    %255 = vmatpush1.xpose.msra.mxu0 0.0
    %256 = vmatprep.subr.mxu0 0.0
    %257 = vmatpush1.xpose.msra.mxu0 0.0
    %258 = vmatprep.subr.mxu0 0.0
    %259 = vmatpush1.xpose.msra.mxu0 0.0
    %260 = vmatprep.subr.mxu0 0.0
    %261 = vmatpush1.xpose.msra.mxu0 0.0
    %262 = vmatprep.subr.mxu0 0.0
    %263 = vmatpush1.xpose.msra.mxu0 0.0
    %264 = vmatprep.subr.mxu0 0.0
    %265 = vmatpush1.xpose.msra.mxu0 0.0
    %266 = vmatprep.mubr.f32.mxu0 0.0
    %267 = vmatmul.mubr.f32.gmra.mrb[0].mxu0 %v198
    %v268 = vpop.f32.mrb[0].mxu0
    %v269 = vadd.f32 %v187, %v268
    %v270 = vpop.f32.mrb[0].mxu0
    %271 = vdwg.mxu0
    %273 = vrot.lane.b32.xlu0 %v173, 96
    %v274 = vpop.permute.xlu0 %273
    %v275 = vsel %vm197, %v173, 0
    %v277 = vsel %vm197, %v274, 0
    %279 = vmatprep.subr.mxu0 0.0
    %280 = vmatpush1.xpose.msra.mxu0 %v277
    %281 = vmatprep.subr.mxu0 0.0
    %282 = vmatpush1.xpose.msra.mxu0 0.0
    %283 = vmatprep.subr.mxu0 0.0
    %284 = vmatpush1.xpose.msra.mxu0 0.0
    %285 = vmatprep.subr.mxu0 0.0
    %286 = vmatpush1.xpose.msra.mxu0 0.0
    %287 = vmatprep.subr.mxu0 0.0
    %288 = vmatpush1.xpose.msra.mxu0 0.0
    %289 = vmatprep.subr.mxu0 0.0
    %290 = vmatpush1.xpose.msra.mxu0 0.0
    %291 = vmatprep.subr.mxu0 0.0
    %292 = vmatpush1.xpose.msra.mxu0 0.0
    %293 = vmatprep.subr.mxu0 0.0
    %294 = vmatpush1.xpose.msra.mxu0 0.0
    %295 = vmatprep.subr.mxu0 0.0
    %296 = vmatpush1.xpose.msra.mxu0 0.0
    %297 = vmatprep.subr.mxu0 0.0
    %298 = vmatpush1.xpose.msra.mxu0 0.0
    %299 = vmatprep.subr.mxu0 0.0
    %300 = vmatpush1.xpose.msra.mxu0 0.0
    %301 = vmatprep.subr.mxu0 0.0
    %302 = vmatpush1.xpose.msra.mxu0 0.0
    %303 = vmatprep.subr.mxu0 0.0
    %304 = vmatpush1.xpose.msra.mxu0 0.0
    %305 = vmatprep.subr.mxu0 0.0
    %306 = vmatpush1.xpose.msra.mxu0 0.0
    %307 = vmatprep.subr.mxu0 0.0
    %308 = vmatpush1.xpose.msra.mxu0 0.0
    %309 = vmatprep.subr.mxu0 0.0
    %310 = vmatpush1.xpose.msra.mxu0 0.0
    %311 = vmatprep.subr.mxu0 0.0
    %312 = vmatpush1.xpose.msra.mxu0 0.0
    %313 = vmatprep.subr.mxu0 0.0
    %314 = vmatpush1.xpose.msra.mxu0 0.0
    %315 = vmatprep.subr.mxu0 0.0
    %316 = vmatpush1.xpose.msra.mxu0 0.0
    %317 = vmatprep.subr.mxu0 0.0
    %318 = vmatpush1.xpose.msra.mxu0 0.0
    %319 = vmatprep.subr.mxu0 0.0
    %320 = vmatpush1.xpose.msra.mxu0 0.0
    %321 = vmatprep.subr.mxu0 0.0
    %322 = vmatpush1.xpose.msra.mxu0 0.0
    %323 = vmatprep.subr.mxu0 0.0
    %324 = vmatpush1.xpose.msra.mxu0 0.0
    %325 = vmatprep.subr.mxu0 0.0
    %326 = vmatpush1.xpose.msra.mxu0 0.0
    %327 = vmatprep.subr.mxu0 0.0
    %328 = vmatpush1.xpose.msra.mxu0 0.0
    %329 = vmatprep.subr.mxu0 0.0
    %330 = vmatpush1.xpose.msra.mxu0 0.0
    %331 = vmatprep.subr.mxu0 0.0
    %332 = vmatpush1.xpose.msra.mxu0 0.0
    %333 = vmatprep.subr.mxu0 0.0
    %334 = vmatpush1.xpose.msra.mxu0 0.0
    %335 = vmatprep.subr.mxu0 0.0
    %336 = vmatpush1.xpose.msra.mxu0 0.0
    %337 = vmatprep.subr.mxu0 0.0
    %338 = vmatpush1.xpose.msra.mxu0 0.0
    %339 = vmatprep.subr.mxu0 0.0
    %340 = vmatpush1.xpose.msra.mxu0 0.0
    %341 = vmatprep.subr.mxu0 0.0
    %342 = vmatpush1.xpose.msra.mxu0 0.0
    %343 = vmatprep.mubr.f32.mxu0 0.0
    %344 = vmatmul.mubr.f32.gmra.mrb[0].mxu0 %v275
    %v345 = vpop.f32.mrb[0].mxu0
    %v346 = vadd.f32 %v191, %v345
    %v347 = vpop.f32.mrb[0].mxu0
    %348 = vdwg.mxu0
    %v349 = vsel %vm197, %v269, -inf
    %350 = vmax.xlane.f32.xlu0 %v349
    %v351 = vpop.xlane.xlu0 %350
    %v352 = vsel %vm197, %v346, -inf
    %353 = vmax.xlane.f32.xlu0 %v352
    %v354 = vpop.xlane.xlu0 %353
    %v355 = vsub.f32 %v269, %v351
    %v356 = vsub.f32 %v346, %v354
    %v357 = vmul.f32 %v355, 1.442695
    %v358 = vpow.pop %v357
    %v359 = vmul.f32 %v356, 1.442695
    %v360 = vpow.pop %v359
    %v361 = vsel %vm197, %v358, 0.0
    %362 = vadd.xlane.f32.xlu0 %v361
    %v363 = vpop.xlane.xlu0 %362
    %v364 = vsel %vm197, %v360, 0.0
    %365 = vadd.xlane.f32.xlu0 %v364
    %v366 = vpop.xlane.xlu0 %365
    %v367 = vrcp.pop %v363
    %v368 = vrcp.pop %v366
    %v369 = vmul.f32 %v358, %v367
    %v370 = vmul.f32 %v360, %v368
    %371 = vrot.lane.b32.xlu0 %v168, 64
    %v372 = vpop.permute.xlu0 %371
    %v375 = vsel %vm197, %v369, 0
    %377 = vmatprep.subr.mxu0 0.0
    %378 = vmatpush1.msra.mxu0 %v372
    %379 = vmatprep.subr.mxu0 0.0
    %380 = vmatpush1.msra.mxu0 0.0
    %381 = vmatprep.subr.mxu0 0.0
    %382 = vmatpush1.msra.mxu0 0.0
    %383 = vmatprep.subr.mxu0 0.0
    %384 = vmatpush1.msra.mxu0 0.0
    %385 = vmatprep.subr.mxu0 0.0
    %386 = vmatpush1.msra.mxu0 0.0
    %387 = vmatprep.subr.mxu0 0.0
    %388 = vmatpush1.msra.mxu0 0.0
    %389 = vmatprep.subr.mxu0 0.0
    %390 = vmatpush1.msra.mxu0 0.0
    %391 = vmatprep.subr.mxu0 0.0
    %392 = vmatpush1.msra.mxu0 0.0
    %393 = vmatprep.subr.mxu0 0.0
    %394 = vmatpush1.msra.mxu0 0.0
    %395 = vmatprep.subr.mxu0 0.0
    %396 = vmatpush1.msra.mxu0 0.0
    %397 = vmatprep.subr.mxu0 0.0
    %398 = vmatpush1.msra.mxu0 0.0
    %399 = vmatprep.subr.mxu0 0.0
    %400 = vmatpush1.msra.mxu0 0.0
    %401 = vmatprep.subr.mxu0 0.0
    %402 = vmatpush1.msra.mxu0 0.0
    %403 = vmatprep.subr.mxu0 0.0
    %404 = vmatpush1.msra.mxu0 0.0
    %405 = vmatprep.subr.mxu0 0.0
    %406 = vmatpush1.msra.mxu0 0.0
    %407 = vmatprep.subr.mxu0 0.0
    %408 = vmatpush1.msra.mxu0 0.0
    %409 = vmatprep.subr.mxu0 0.0
    %410 = vmatpush1.msra.mxu0 0.0
    %411 = vmatprep.subr.mxu0 0.0
    %412 = vmatpush1.msra.mxu0 0.0
    %413 = vmatprep.subr.mxu0 0.0
    %414 = vmatpush1.msra.mxu0 0.0
    %415 = vmatprep.subr.mxu0 0.0
    %416 = vmatpush1.msra.mxu0 0.0
    %417 = vmatprep.subr.mxu0 0.0
    %418 = vmatpush1.msra.mxu0 0.0
    %419 = vmatprep.subr.mxu0 0.0
    %420 = vmatpush1.msra.mxu0 0.0
    %421 = vmatprep.subr.mxu0 0.0
    %422 = vmatpush1.msra.mxu0 0.0
    %423 = vmatprep.subr.mxu0 0.0
    %424 = vmatpush1.msra.mxu0 0.0
    %425 = vmatprep.subr.mxu0 0.0
    %426 = vmatpush1.msra.mxu0 0.0
    %427 = vmatprep.subr.mxu0 0.0
    %428 = vmatpush1.msra.mxu0 0.0
    %429 = vmatprep.subr.mxu0 0.0
    %430 = vmatpush1.msra.mxu0 0.0
    %431 = vmatprep.subr.mxu0 0.0
    %432 = vmatpush1.msra.mxu0 0.0
    %433 = vmatprep.subr.mxu0 0.0
    %434 = vmatpush1.msra.mxu0 0.0
    %435 = vmatprep.subr.mxu0 0.0
    %436 = vmatpush1.msra.mxu0 0.0
    %437 = vmatprep.subr.mxu0 0.0
    %438 = vmatpush1.msra.mxu0 0.0
    %439 = vmatprep.subr.mxu0 0.0
    %440 = vmatpush1.msra.mxu0 0.0
    %441 = vmatprep.mubr.f32.mxu0 0.0
    %442 = vmatmul.mubr.f32.gmra.mrb[0].mxu0 %v375
    %v443 = vpop.f32.mrb[0].mxu0
    %v444 = vadd.f32 0.0, %v443
    %v445 = vpop.f32.mrb[0].mxu0
    %446 = vdwg.mxu0
    %447 = vrot.lane.b32.xlu0 %v173, 64
    %v448 = vpop.permute.xlu0 %447
    %v451 = vsel %vm197, %v370, 0
    %453 = vmatprep.subr.mxu0 0.0
    %454 = vmatpush1.msra.mxu0 %v448
    %455 = vmatprep.subr.mxu0 0.0
    %456 = vmatpush1.msra.mxu0 0.0
    %457 = vmatprep.subr.mxu0 0.0
    %458 = vmatpush1.msra.mxu0 0.0
    %459 = vmatprep.subr.mxu0 0.0
    %460 = vmatpush1.msra.mxu0 0.0
    %461 = vmatprep.subr.mxu0 0.0
    %462 = vmatpush1.msra.mxu0 0.0
    %463 = vmatprep.subr.mxu0 0.0
    %464 = vmatpush1.msra.mxu0 0.0
    %465 = vmatprep.subr.mxu0 0.0
    %466 = vmatpush1.msra.mxu0 0.0
    %467 = vmatprep.subr.mxu0 0.0
    %468 = vmatpush1.msra.mxu0 0.0
    %469 = vmatprep.subr.mxu0 0.0
    %470 = vmatpush1.msra.mxu0 0.0
    %471 = vmatprep.subr.mxu0 0.0
    %472 = vmatpush1.msra.mxu0 0.0
    %473 = vmatprep.subr.mxu0 0.0
    %474 = vmatpush1.msra.mxu0 0.0
    %475 = vmatprep.subr.mxu0 0.0
    %476 = vmatpush1.msra.mxu0 0.0
    %477 = vmatprep.subr.mxu0 0.0
    %478 = vmatpush1.msra.mxu0 0.0
    %479 = vmatprep.subr.mxu0 0.0
    %480 = vmatpush1.msra.mxu0 0.0
    %481 = vmatprep.subr.mxu0 0.0
    %482 = vmatpush1.msra.mxu0 0.0
    %483 = vmatprep.subr.mxu0 0.0
    %484 = vmatpush1.msra.mxu0 0.0
    %485 = vmatprep.subr.mxu0 0.0
    %486 = vmatpush1.msra.mxu0 0.0
    %487 = vmatprep.subr.mxu0 0.0
    %488 = vmatpush1.msra.mxu0 0.0
    %489 = vmatprep.subr.mxu0 0.0
    %490 = vmatpush1.msra.mxu0 0.0
    %491 = vmatprep.subr.mxu0 0.0
    %492 = vmatpush1.msra.mxu0 0.0
    %493 = vmatprep.subr.mxu0 0.0
    %494 = vmatpush1.msra.mxu0 0.0
    %495 = vmatprep.subr.mxu0 0.0
    %496 = vmatpush1.msra.mxu0 0.0
    %497 = vmatprep.subr.mxu0 0.0
    %498 = vmatpush1.msra.mxu0 0.0
    %499 = vmatprep.subr.mxu0 0.0
    %500 = vmatpush1.msra.mxu0 0.0
    %501 = vmatprep.subr.mxu0 0.0
    %502 = vmatpush1.msra.mxu0 0.0
    %503 = vmatprep.subr.mxu0 0.0
    %504 = vmatpush1.msra.mxu0 0.0
    %505 = vmatprep.subr.mxu0 0.0
    %506 = vmatpush1.msra.mxu0 0.0
    %507 = vmatprep.subr.mxu0 0.0
    %508 = vmatpush1.msra.mxu0 0.0
    %509 = vmatprep.subr.mxu0 0.0
    %510 = vmatpush1.msra.mxu0 0.0
    %511 = vmatprep.subr.mxu0 0.0
    %512 = vmatpush1.msra.mxu0 0.0
    %513 = vmatprep.subr.mxu0 0.0
    %514 = vmatpush1.msra.mxu0 0.0
    %515 = vmatprep.subr.mxu0 0.0
    %516 = vmatpush1.msra.mxu0 0.0
    %517 = vmatprep.mubr.f32.mxu0 0.0
    %518 = vmatmul.mubr.f32.gmra.mrb[0].mxu0 %v451
    %v519 = vpop.f32.mrb[0].mxu0
    %v520 = vadd.f32 0.0, %v519
    %v521 = vpop.f32.mrb[0].mxu0
    %522 = vdwg.mxu0
    %523 = vrot.lane.b32.xlu0 %v168, 120
    %v524 = vpop.permute.xlu0 %523
    %525 = vrot.lane.b32.xlu0 %v168, 88
    %v526 = vpop.permute.xlu0 %525
    %v527 = vsel %vm197, %v524, 0
    %v529 = vsel %vm197, %v526, 0
    %531 = vmatprep.subr.mxu0 0.0
    %532 = vmatpush1.xpose.msra.mxu0 %v529
    %533 = vmatprep.subr.mxu0 0.0
    %534 = vmatpush1.xpose.msra.mxu0 0.0
    %535 = vmatprep.subr.mxu0 0.0
    %536 = vmatpush1.xpose.msra.mxu0 0.0
    %537 = vmatprep.subr.mxu0 0.0
    %538 = vmatpush1.xpose.msra.mxu0 0.0
    %539 = vmatprep.subr.mxu0 0.0
    %540 = vmatpush1.xpose.msra.mxu0 0.0
    %541 = vmatprep.subr.mxu0 0.0
    %542 = vmatpush1.xpose.msra.mxu0 0.0
    %543 = vmatprep.subr.mxu0 0.0
    %544 = vmatpush1.xpose.msra.mxu0 0.0
    %545 = vmatprep.subr.mxu0 0.0
    %546 = vmatpush1.xpose.msra.mxu0 0.0
    %547 = vmatprep.subr.mxu0 0.0
    %548 = vmatpush1.xpose.msra.mxu0 0.0
    %549 = vmatprep.subr.mxu0 0.0
    %550 = vmatpush1.xpose.msra.mxu0 0.0
    %551 = vmatprep.subr.mxu0 0.0
    %552 = vmatpush1.xpose.msra.mxu0 0.0
    %553 = vmatprep.subr.mxu0 0.0
    %554 = vmatpush1.xpose.msra.mxu0 0.0
    %555 = vmatprep.subr.mxu0 0.0
    %556 = vmatpush1.xpose.msra.mxu0 0.0
    %557 = vmatprep.subr.mxu0 0.0
    %558 = vmatpush1.xpose.msra.mxu0 0.0
    %559 = vmatprep.subr.mxu0 0.0
    %560 = vmatpush1.xpose.msra.mxu0 0.0
    %561 = vmatprep.subr.mxu0 0.0
    %562 = vmatpush1.xpose.msra.mxu0 0.0
    %563 = vmatprep.subr.mxu0 0.0
    %564 = vmatpush1.xpose.msra.mxu0 0.0
    %565 = vmatprep.subr.mxu0 0.0
    %566 = vmatpush1.xpose.msra.mxu0 0.0
    %567 = vmatprep.subr.mxu0 0.0
    %568 = vmatpush1.xpose.msra.mxu0 0.0
    %569 = vmatprep.subr.mxu0 0.0
    %570 = vmatpush1.xpose.msra.mxu0 0.0
    %571 = vmatprep.subr.mxu0 0.0
    %572 = vmatpush1.xpose.msra.mxu0 0.0
    %573 = vmatprep.subr.mxu0 0.0
    %574 = vmatpush1.xpose.msra.mxu0 0.0
    %575 = vmatprep.subr.mxu0 0.0
    %576 = vmatpush1.xpose.msra.mxu0 0.0
    %577 = vmatprep.subr.mxu0 0.0
    %578 = vmatpush1.xpose.msra.mxu0 0.0
    %579 = vmatprep.subr.mxu0 0.0
    %580 = vmatpush1.xpose.msra.mxu0 0.0
    %581 = vmatprep.subr.mxu0 0.0
    %582 = vmatpush1.xpose.msra.mxu0 0.0
    %583 = vmatprep.subr.mxu0 0.0
    %584 = vmatpush1.xpose.msra.mxu0 0.0
    %585 = vmatprep.subr.mxu0 0.0
    %586 = vmatpush1.xpose.msra.mxu0 0.0
    %587 = vmatprep.subr.mxu0 0.0
    %588 = vmatpush1.xpose.msra.mxu0 0.0
    %589 = vmatprep.subr.mxu0 0.0
    %590 = vmatpush1.xpose.msra.mxu0 0.0
    %591 = vmatprep.subr.mxu0 0.0
    %592 = vmatpush1.xpose.msra.mxu0 0.0
    %593 = vmatprep.subr.mxu0 0.0
    %594 = vmatpush1.xpose.msra.mxu0 0.0
    %595 = vmatprep.mubr.f32.mxu0 0.0
    %596 = vmatmul.mubr.f32.gmra.mrb[0].mxu0 %v527
    %v597 = vpop.f32.mrb[0].mxu0
    %v598 = vadd.f32 %v187, %v597
    %v599 = vpop.f32.mrb[0].mxu0
    %600 = vdwg.mxu0
    %601 = vrot.lane.b32.xlu0 %v173, 120
    %v602 = vpop.permute.xlu0 %601
    %603 = vrot.lane.b32.xlu0 %v173, 88
    %v604 = vpop.permute.xlu0 %603
    %v605 = vsel %vm197, %v602, 0
    %v607 = vsel %vm197, %v604, 0
    %609 = vmatprep.subr.mxu0 0.0
    %610 = vmatpush1.xpose.msra.mxu0 %v607
    %611 = vmatprep.subr.mxu0 0.0
    %612 = vmatpush1.xpose.msra.mxu0 0.0
    %613 = vmatprep.subr.mxu0 0.0
    %614 = vmatpush1.xpose.msra.mxu0 0.0
    %615 = vmatprep.subr.mxu0 0.0
    %616 = vmatpush1.xpose.msra.mxu0 0.0
    %617 = vmatprep.subr.mxu0 0.0
    %618 = vmatpush1.xpose.msra.mxu0 0.0
    %619 = vmatprep.subr.mxu0 0.0
    %620 = vmatpush1.xpose.msra.mxu0 0.0
    %621 = vmatprep.subr.mxu0 0.0
    %622 = vmatpush1.xpose.msra.mxu0 0.0
    %623 = vmatprep.subr.mxu0 0.0
    %624 = vmatpush1.xpose.msra.mxu0 0.0
    %625 = vmatprep.subr.mxu0 0.0
    %626 = vmatpush1.xpose.msra.mxu0 0.0
    %627 = vmatprep.subr.mxu0 0.0
    %628 = vmatpush1.xpose.msra.mxu0 0.0
    %629 = vmatprep.subr.mxu0 0.0
    %630 = vmatpush1.xpose.msra.mxu0 0.0
    %631 = vmatprep.subr.mxu0 0.0
    %632 = vmatpush1.xpose.msra.mxu0 0.0
    %633 = vmatprep.subr.mxu0 0.0
    %634 = vmatpush1.xpose.msra.mxu0 0.0
    %635 = vmatprep.subr.mxu0 0.0
    %636 = vmatpush1.xpose.msra.mxu0 0.0
    %637 = vmatprep.subr.mxu0 0.0
    %638 = vmatpush1.xpose.msra.mxu0 0.0
    %639 = vmatprep.subr.mxu0 0.0
    %640 = vmatpush1.xpose.msra.mxu0 0.0
    %641 = vmatprep.subr.mxu0 0.0
    %642 = vmatpush1.xpose.msra.mxu0 0.0
    %643 = vmatprep.subr.mxu0 0.0
    %644 = vmatpush1.xpose.msra.mxu0 0.0
    %645 = vmatprep.subr.mxu0 0.0
    %646 = vmatpush1.xpose.msra.mxu0 0.0
    %647 = vmatprep.subr.mxu0 0.0
    %648 = vmatpush1.xpose.msra.mxu0 0.0
    %649 = vmatprep.subr.mxu0 0.0
    %650 = vmatpush1.xpose.msra.mxu0 0.0
    %651 = vmatprep.subr.mxu0 0.0
    %652 = vmatpush1.xpose.msra.mxu0 0.0
    %653 = vmatprep.subr.mxu0 0.0
    %654 = vmatpush1.xpose.msra.mxu0 0.0
    %655 = vmatprep.subr.mxu0 0.0
    %656 = vmatpush1.xpose.msra.mxu0 0.0
    %657 = vmatprep.subr.mxu0 0.0
    %658 = vmatpush1.xpose.msra.mxu0 0.0
    %659 = vmatprep.subr.mxu0 0.0
    %660 = vmatpush1.xpose.msra.mxu0 0.0
    %661 = vmatprep.subr.mxu0 0.0
    %662 = vmatpush1.xpose.msra.mxu0 0.0
    %663 = vmatprep.subr.mxu0 0.0
    %664 = vmatpush1.xpose.msra.mxu0 0.0
    %665 = vmatprep.subr.mxu0 0.0
    %666 = vmatpush1.xpose.msra.mxu0 0.0
    %667 = vmatprep.subr.mxu0 0.0
    %668 = vmatpush1.xpose.msra.mxu0 0.0
    %669 = vmatprep.subr.mxu0 0.0
    %670 = vmatpush1.xpose.msra.mxu0 0.0
    %671 = vmatprep.subr.mxu0 0.0
    %672 = vmatpush1.xpose.msra.mxu0 0.0
    %673 = vmatprep.mubr.f32.mxu0 0.0
    %674 = vmatmul.mubr.f32.gmra.mrb[0].mxu0 %v605
    %v675 = vpop.f32.mrb[0].mxu0
    %v676 = vadd.f32 %v191, %v675
    %v677 = vpop.f32.mrb[0].mxu0
    %678 = vdwg.mxu0
    %v679 = vsel %vm197, %v598, -inf
    %680 = vmax.xlane.f32.xlu0 %v679
    %v681 = vpop.xlane.xlu0 %680
    %v682 = vsel %vm197, %v676, -inf
    %683 = vmax.xlane.f32.xlu0 %v682
    %v684 = vpop.xlane.xlu0 %683
    %v685 = vsub.f32 %v598, %v681
    %v686 = vsub.f32 %v676, %v684
    %v687 = vmul.f32 %v685, 1.442695
    %v688 = vpow.pop %v687
    %v689 = vmul.f32 %v686, 1.442695
    %v690 = vpow.pop %v689
    %v691 = vsel %vm197, %v688, 0.0
    %692 = vadd.xlane.f32.xlu0 %v691
    %v693 = vpop.xlane.xlu0 %692
    %v694 = vsel %vm197, %v690, 0.0
    %695 = vadd.xlane.f32.xlu0 %v694
    %v696 = vpop.xlane.xlu0 %695
    %v697 = vrcp.pop %v693
    %v698 = vrcp.pop %v696
    %v699 = vmul.f32 %v688, %v697
    %v700 = vmul.f32 %v690, %v698
    %701 = vrot.lane.b32.xlu0 %v168, 56
    %v702 = vpop.permute.xlu0 %701
    %v705 = vsel %vm197, %v699, 0
    %707 = vmatprep.subr.mxu0 0.0
    %708 = vmatpush1.msra.mxu0 %v702
    %709 = vmatprep.subr.mxu0 0.0
    %710 = vmatpush1.msra.mxu0 0.0
    %711 = vmatprep.subr.mxu0 0.0
    %712 = vmatpush1.msra.mxu0 0.0
    %713 = vmatprep.subr.mxu0 0.0
    %714 = vmatpush1.msra.mxu0 0.0
    %715 = vmatprep.subr.mxu0 0.0
    %716 = vmatpush1.msra.mxu0 0.0
    %717 = vmatprep.subr.mxu0 0.0
    %718 = vmatpush1.msra.mxu0 0.0
    %719 = vmatprep.subr.mxu0 0.0
    %720 = vmatpush1.msra.mxu0 0.0
    %721 = vmatprep.subr.mxu0 0.0
    %722 = vmatpush1.msra.mxu0 0.0
    %723 = vmatprep.subr.mxu0 0.0
    %724 = vmatpush1.msra.mxu0 0.0
    %725 = vmatprep.subr.mxu0 0.0
    %726 = vmatpush1.msra.mxu0 0.0
    %727 = vmatprep.subr.mxu0 0.0
    %728 = vmatpush1.msra.mxu0 0.0
    %729 = vmatprep.subr.mxu0 0.0
    %730 = vmatpush1.msra.mxu0 0.0
    %731 = vmatprep.subr.mxu0 0.0
    %732 = vmatpush1.msra.mxu0 0.0
    %733 = vmatprep.subr.mxu0 0.0
    %734 = vmatpush1.msra.mxu0 0.0
    %735 = vmatprep.subr.mxu0 0.0
    %736 = vmatpush1.msra.mxu0 0.0
    %737 = vmatprep.subr.mxu0 0.0
    %738 = vmatpush1.msra.mxu0 0.0
    %739 = vmatprep.subr.mxu0 0.0
    %740 = vmatpush1.msra.mxu0 0.0
    %741 = vmatprep.subr.mxu0 0.0
    %742 = vmatpush1.msra.mxu0 0.0
    %743 = vmatprep.subr.mxu0 0.0
    %744 = vmatpush1.msra.mxu0 0.0
    %745 = vmatprep.subr.mxu0 0.0
    %746 = vmatpush1.msra.mxu0 0.0
    %747 = vmatprep.subr.mxu0 0.0
    %748 = vmatpush1.msra.mxu0 0.0
    %749 = vmatprep.subr.mxu0 0.0
    %750 = vmatpush1.msra.mxu0 0.0
    %751 = vmatprep.subr.mxu0 0.0
    %752 = vmatpush1.msra.mxu0 0.0
    %753 = vmatprep.subr.mxu0 0.0
    %754 = vmatpush1.msra.mxu0 0.0
    %755 = vmatprep.subr.mxu0 0.0
    %756 = vmatpush1.msra.mxu0 0.0
    %757 = vmatprep.subr.mxu0 0.0
    %758 = vmatpush1.msra.mxu0 0.0
    %759 = vmatprep.subr.mxu0 0.0
    %760 = vmatpush1.msra.mxu0 0.0
    %761 = vmatprep.subr.mxu0 0.0
    %762 = vmatpush1.msra.mxu0 0.0
    %763 = vmatprep.subr.mxu0 0.0
    %764 = vmatpush1.msra.mxu0 0.0
    %765 = vmatprep.subr.mxu0 0.0
    %766 = vmatpush1.msra.mxu0 0.0
    %767 = vmatprep.subr.mxu0 0.0
    %768 = vmatpush1.msra.mxu0 0.0
    %769 = vmatprep.subr.mxu0 0.0
    %770 = vmatpush1.msra.mxu0 0.0
    %771 = vmatprep.mubr.f32.mxu0 0.0
    %772 = vmatmul.mubr.f32.gmra.mrb[0].mxu0 %v705
    %v773 = vpop.f32.mrb[0].mxu0
    %v774 = vadd.f32 0.0, %v773
    %v775 = vpop.f32.mrb[0].mxu0
    %776 = vdwg.mxu0
    %777 = vrot.lane.b32.xlu0 %v173, 56
    %v778 = vpop.permute.xlu0 %777
    %v781 = vsel %vm197, %v700, 0
    %783 = vmatprep.subr.mxu0 0.0
    %784 = vmatpush1.msra.mxu0 %v778
    %785 = vmatprep.subr.mxu0 0.0
    %786 = vmatpush1.msra.mxu0 0.0
    %787 = vmatprep.subr.mxu0 0.0
    %788 = vmatpush1.msra.mxu0 0.0
    %789 = vmatprep.subr.mxu0 0.0
    %790 = vmatpush1.msra.mxu0 0.0
    %791 = vmatprep.subr.mxu0 0.0
    %792 = vmatpush1.msra.mxu0 0.0
    %793 = vmatprep.subr.mxu0 0.0
    %794 = vmatpush1.msra.mxu0 0.0
    %795 = vmatprep.subr.mxu0 0.0
    %796 = vmatpush1.msra.mxu0 0.0
    %797 = vmatprep.subr.mxu0 0.0
    %798 = vmatpush1.msra.mxu0 0.0
    %799 = vmatprep.subr.mxu0 0.0
    %800 = vmatpush1.msra.mxu0 0.0
    %801 = vmatprep.subr.mxu0 0.0
    %802 = vmatpush1.msra.mxu0 0.0
    %803 = vmatprep.subr.mxu0 0.0
    %804 = vmatpush1.msra.mxu0 0.0
    %805 = vmatprep.subr.mxu0 0.0
    %806 = vmatpush1.msra.mxu0 0.0
    %807 = vmatprep.subr.mxu0 0.0
    %808 = vmatpush1.msra.mxu0 0.0
    %809 = vmatprep.subr.mxu0 0.0
    %810 = vmatpush1.msra.mxu0 0.0
    %811 = vmatprep.subr.mxu0 0.0
    %812 = vmatpush1.msra.mxu0 0.0
    %813 = vmatprep.subr.mxu0 0.0
    %814 = vmatpush1.msra.mxu0 0.0
    %815 = vmatprep.subr.mxu0 0.0
    %816 = vmatpush1.msra.mxu0 0.0
    %817 = vmatprep.subr.mxu0 0.0
    %818 = vmatpush1.msra.mxu0 0.0
    %819 = vmatprep.subr.mxu0 0.0
    %820 = vmatpush1.msra.mxu0 0.0
    %821 = vmatprep.subr.mxu0 0.0
    %822 = vmatpush1.msra.mxu0 0.0
    %823 = vmatprep.subr.mxu0 0.0
    %824 = vmatpush1.msra.mxu0 0.0
    %825 = vmatprep.subr.mxu0 0.0
    %826 = vmatpush1.msra.mxu0 0.0
    %827 = vmatprep.subr.mxu0 0.0
    %828 = vmatpush1.msra.mxu0 0.0
    %829 = vmatprep.subr.mxu0 0.0
    %830 = vmatpush1.msra.mxu0 0.0
    %831 = vmatprep.subr.mxu0 0.0
    %832 = vmatpush1.msra.mxu0 0.0
    %833 = vmatprep.subr.mxu0 0.0
    %834 = vmatpush1.msra.mxu0 0.0
    %835 = vmatprep.subr.mxu0 0.0
    %836 = vmatpush1.msra.mxu0 0.0
    %837 = vmatprep.subr.mxu0 0.0
    %838 = vmatpush1.msra.mxu0 0.0
    %839 = vmatprep.subr.mxu0 0.0
    %840 = vmatpush1.msra.mxu0 0.0
    %841 = vmatprep.subr.mxu0 0.0
    %842 = vmatpush1.msra.mxu0 0.0
    %843 = vmatprep.subr.mxu0 0.0
    %844 = vmatpush1.msra.mxu0 0.0
    %845 = vmatprep.subr.mxu0 0.0
    %846 = vmatpush1.msra.mxu0 0.0
    %847 = vmatprep.mubr.f32.mxu0 0.0
    %848 = vmatmul.mubr.f32.gmra.mrb[0].mxu0 %v781
    %v849 = vpop.f32.mrb[0].mxu0
    %v850 = vadd.f32 0.0, %v849
    %v851 = vpop.f32.mrb[0].mxu0
    %852 = vdwg.mxu0
    %853 = vrot.lane.b32.xlu0 %v168, 112
    %v854 = vpop.permute.xlu0 %853
    %855 = vrot.lane.b32.xlu0 %v168, 80
    %v856 = vpop.permute.xlu0 %855
    %v857 = vsel %vm197, %v854, 0
    %v859 = vsel %vm197, %v856, 0
    %861 = vmatprep.subr.mxu0 0.0
    %862 = vmatpush1.xpose.msra.mxu0 %v859
    %863 = vmatprep.subr.mxu0 0.0
    %864 = vmatpush1.xpose.msra.mxu0 0.0
    %865 = vmatprep.subr.mxu0 0.0
    %866 = vmatpush1.xpose.msra.mxu0 0.0
    %867 = vmatprep.subr.mxu0 0.0
    %868 = vmatpush1.xpose.msra.mxu0 0.0
    %869 = vmatprep.subr.mxu0 0.0
    %870 = vmatpush1.xpose.msra.mxu0 0.0
    %871 = vmatprep.subr.mxu0 0.0
    %872 = vmatpush1.xpose.msra.mxu0 0.0
    %873 = vmatprep.subr.mxu0 0.0
    %874 = vmatpush1.xpose.msra.mxu0 0.0
    %875 = vmatprep.subr.mxu0 0.0
    %876 = vmatpush1.xpose.msra.mxu0 0.0
    %877 = vmatprep.subr.mxu0 0.0
    %878 = vmatpush1.xpose.msra.mxu0 0.0
    %879 = vmatprep.subr.mxu0 0.0
    %880 = vmatpush1.xpose.msra.mxu0 0.0
    %881 = vmatprep.subr.mxu0 0.0
    %882 = vmatpush1.xpose.msra.mxu0 0.0
    %883 = vmatprep.subr.mxu0 0.0
    %884 = vmatpush1.xpose.msra.mxu0 0.0
    %885 = vmatprep.subr.mxu0 0.0
    %886 = vmatpush1.xpose.msra.mxu0 0.0
    %887 = vmatprep.subr.mxu0 0.0
    %888 = vmatpush1.xpose.msra.mxu0 0.0
    %889 = vmatprep.subr.mxu0 0.0
    %890 = vmatpush1.xpose.msra.mxu0 0.0
    %891 = vmatprep.subr.mxu0 0.0
    %892 = vmatpush1.xpose.msra.mxu0 0.0
    %893 = vmatprep.subr.mxu0 0.0
    %894 = vmatpush1.xpose.msra.mxu0 0.0
    %895 = vmatprep.subr.mxu0 0.0
    %896 = vmatpush1.xpose.msra.mxu0 0.0
    %897 = vmatprep.subr.mxu0 0.0
    %898 = vmatpush1.xpose.msra.mxu0 0.0
    %899 = vmatprep.subr.mxu0 0.0
    %900 = vmatpush1.xpose.msra.mxu0 0.0
    %901 = vmatprep.subr.mxu0 0.0
    %902 = vmatpush1.xpose.msra.mxu0 0.0
    %903 = vmatprep.subr.mxu0 0.0
    %904 = vmatpush1.xpose.msra.mxu0 0.0
    %905 = vmatprep.subr.mxu0 0.0
    %906 = vmatpush1.xpose.msra.mxu0 0.0
    %907 = vmatprep.subr.mxu0 0.0
    %908 = vmatpush1.xpose.msra.mxu0 0.0
    %909 = vmatprep.subr.mxu0 0.0
    %910 = vmatpush1.xpose.msra.mxu0 0.0
    %911 = vmatprep.subr.mxu0 0.0
    %912 = vmatpush1.xpose.msra.mxu0 0.0
    %913 = vmatprep.subr.mxu0 0.0
    %914 = vmatpush1.xpose.msra.mxu0 0.0
    %915 = vmatprep.subr.mxu0 0.0
    %916 = vmatpush1.xpose.msra.mxu0 0.0
    %917 = vmatprep.subr.mxu0 0.0
    %918 = vmatpush1.xpose.msra.mxu0 0.0
    %919 = vmatprep.subr.mxu0 0.0
    %920 = vmatpush1.xpose.msra.mxu0 0.0
    %921 = vmatprep.subr.mxu0 0.0
    %922 = vmatpush1.xpose.msra.mxu0 0.0
    %923 = vmatprep.subr.mxu0 0.0
    %924 = vmatpush1.xpose.msra.mxu0 0.0
    %925 = vmatprep.mubr.f32.mxu0 0.0
    %926 = vmatmul.mubr.f32.gmra.mrb[0].mxu0 %v857
    %v927 = vpop.f32.mrb[0].mxu0
    %v928 = vadd.f32 %v187, %v927
    %v929 = vpop.f32.mrb[0].mxu0
    %930 = vdwg.mxu0
    %931 = vrot.lane.b32.xlu0 %v173, 112
    %v932 = vpop.permute.xlu0 %931
    %933 = vrot.lane.b32.xlu0 %v173, 80
    %v934 = vpop.permute.xlu0 %933
    %v935 = vsel %vm197, %v932, 0
    %v937 = vsel %vm197, %v934, 0
    %939 = vmatprep.subr.mxu0 0.0
    %940 = vmatpush1.xpose.msra.mxu0 %v937
    %941 = vmatprep.subr.mxu0 0.0
    %942 = vmatpush1.xpose.msra.mxu0 0.0
    %943 = vmatprep.subr.mxu0 0.0
    %944 = vmatpush1.xpose.msra.mxu0 0.0
    %945 = vmatprep.subr.mxu0 0.0
    %946 = vmatpush1.xpose.msra.mxu0 0.0
    %947 = vmatprep.subr.mxu0 0.0
    %948 = vmatpush1.xpose.msra.mxu0 0.0
    %949 = vmatprep.subr.mxu0 0.0
    %950 = vmatpush1.xpose.msra.mxu0 0.0
    %951 = vmatprep.subr.mxu0 0.0
    %952 = vmatpush1.xpose.msra.mxu0 0.0
    %953 = vmatprep.subr.mxu0 0.0
    %954 = vmatpush1.xpose.msra.mxu0 0.0
    %955 = vmatprep.subr.mxu0 0.0
    %956 = vmatpush1.xpose.msra.mxu0 0.0
    %957 = vmatprep.subr.mxu0 0.0
    %958 = vmatpush1.xpose.msra.mxu0 0.0
    %959 = vmatprep.subr.mxu0 0.0
    %960 = vmatpush1.xpose.msra.mxu0 0.0
    %961 = vmatprep.subr.mxu0 0.0
    %962 = vmatpush1.xpose.msra.mxu0 0.0
    %963 = vmatprep.subr.mxu0 0.0
    %964 = vmatpush1.xpose.msra.mxu0 0.0
    %965 = vmatprep.subr.mxu0 0.0
    %966 = vmatpush1.xpose.msra.mxu0 0.0
    %967 = vmatprep.subr.mxu0 0.0
    %968 = vmatpush1.xpose.msra.mxu0 0.0
    %969 = vmatprep.subr.mxu0 0.0
    %970 = vmatpush1.xpose.msra.mxu0 0.0
    %971 = vmatprep.subr.mxu0 0.0
    %972 = vmatpush1.xpose.msra.mxu0 0.0
    %973 = vmatprep.subr.mxu0 0.0
    %974 = vmatpush1.xpose.msra.mxu0 0.0
    %975 = vmatprep.subr.mxu0 0.0
    %976 = vmatpush1.xpose.msra.mxu0 0.0
    %977 = vmatprep.subr.mxu0 0.0
    %978 = vmatpush1.xpose.msra.mxu0 0.0
    %979 = vmatprep.subr.mxu0 0.0
    %980 = vmatpush1.xpose.msra.mxu0 0.0
    %981 = vmatprep.subr.mxu0 0.0
    %982 = vmatpush1.xpose.msra.mxu0 0.0
    %983 = vmatprep.subr.mxu0 0.0
    %984 = vmatpush1.xpose.msra.mxu0 0.0
    %985 = vmatprep.subr.mxu0 0.0
    %986 = vmatpush1.xpose.msra.mxu0 0.0
    %987 = vmatprep.subr.mxu0 0.0
    %988 = vmatpush1.xpose.msra.mxu0 0.0
    %989 = vmatprep.subr.mxu0 0.0
    %990 = vmatpush1.xpose.msra.mxu0 0.0
    %991 = vmatprep.subr.mxu0 0.0
    %992 = vmatpush1.xpose.msra.mxu0 0.0
    %993 = vmatprep.subr.mxu0 0.0
    %994 = vmatpush1.xpose.msra.mxu0 0.0
    %995 = vmatprep.subr.mxu0 0.0
    %996 = vmatpush1.xpose.msra.mxu0 0.0
    %997 = vmatprep.subr.mxu0 0.0
    %998 = vmatpush1.xpose.msra.mxu0 0.0
    %999 = vmatprep.subr.mxu0 0.0
    %1000 = vmatpush1.xpose.msra.mxu0 0.0
    %1001 = vmatprep.subr.mxu0 0.0
    %1002 = vmatpush1.xpose.msra.mxu0 0.0
    %1003 = vmatprep.mubr.f32.mxu0 0.0
    %1004 = vmatmul.mubr.f32.gmra.mrb[0].mxu0 %v935
    %v1005 = vpop.f32.mrb[0].mxu0
    %v1006 = vadd.f32 %v191, %v1005
    %v1007 = vpop.f32.mrb[0].mxu0
    %1008 = vdwg.mxu0
    %v1009 = vsel %vm197, %v928, -inf
    %1010 = vmax.xlane.f32.xlu0 %v1009
    %v1011 = vpop.xlane.xlu0 %1010
    %v1012 = vsel %vm197, %v1006, -inf
    %1013 = vmax.xlane.f32.xlu0 %v1012
    %v1014 = vpop.xlane.xlu0 %1013
    %v1015 = vsub.f32 %v928, %v1011
    %v1016 = vsub.f32 %v1006, %v1014
    %v1017 = vmul.f32 %v1015, 1.442695
    %v1018 = vpow.pop %v1017
    %v1019 = vmul.f32 %v1016, 1.442695
    %v1020 = vpow.pop %v1019
    %v1021 = vsel %vm197, %v1018, 0.0
    %1022 = vadd.xlane.f32.xlu0 %v1021
    %v1023 = vpop.xlane.xlu0 %1022
    %v1024 = vsel %vm197, %v1020, 0.0
    %1025 = vadd.xlane.f32.xlu0 %v1024
    %v1026 = vpop.xlane.xlu0 %1025
    %v1027 = vrcp.pop %v1023
    %v1028 = vrcp.pop %v1026
    %v1029 = vmul.f32 %v1018, %v1027
    %v1030 = vmul.f32 %v1020, %v1028
    %1031 = vrot.lane.b32.xlu0 %v168, 48
    %v1032 = vpop.permute.xlu0 %1031
    %v1035 = vsel %vm197, %v1029, 0
    %1037 = vmatprep.subr.mxu0 0.0
    %1038 = vmatpush1.msra.mxu0 %v1032
    %1039 = vmatprep.subr.mxu0 0.0
    %1040 = vmatpush1.msra.mxu0 0.0
    %1041 = vmatprep.subr.mxu0 0.0
    %1042 = vmatpush1.msra.mxu0 0.0
    %1043 = vmatprep.subr.mxu0 0.0
    %1044 = vmatpush1.msra.mxu0 0.0
    %1045 = vmatprep.subr.mxu0 0.0
    %1046 = vmatpush1.msra.mxu0 0.0
    %1047 = vmatprep.subr.mxu0 0.0
    %1048 = vmatpush1.msra.mxu0 0.0
    %1049 = vmatprep.subr.mxu0 0.0
    %1050 = vmatpush1.msra.mxu0 0.0
    %1051 = vmatprep.subr.mxu0 0.0
    %1052 = vmatpush1.msra.mxu0 0.0
    %1053 = vmatprep.subr.mxu0 0.0
    %1054 = vmatpush1.msra.mxu0 0.0
    %1055 = vmatprep.subr.mxu0 0.0
    %1056 = vmatpush1.msra.mxu0 0.0
    %1057 = vmatprep.subr.mxu0 0.0
    %1058 = vmatpush1.msra.mxu0 0.0
    %1059 = vmatprep.subr.mxu0 0.0
    %1060 = vmatpush1.msra.mxu0 0.0
    %1061 = vmatprep.subr.mxu0 0.0
    %1062 = vmatpush1.msra.mxu0 0.0
    %1063 = vmatprep.subr.mxu0 0.0
    %1064 = vmatpush1.msra.mxu0 0.0
    %1065 = vmatprep.subr.mxu0 0.0
    %1066 = vmatpush1.msra.mxu0 0.0
    %1067 = vmatprep.subr.mxu0 0.0
    %1068 = vmatpush1.msra.mxu0 0.0
    %1069 = vmatprep.subr.mxu0 0.0
    %1070 = vmatpush1.msra.mxu0 0.0
    %1071 = vmatprep.subr.mxu0 0.0
    %1072 = vmatpush1.msra.mxu0 0.0
    %1073 = vmatprep.subr.mxu0 0.0
    %1074 = vmatpush1.msra.mxu0 0.0
    %1075 = vmatprep.subr.mxu0 0.0
    %1076 = vmatpush1.msra.mxu0 0.0
    %1077 = vmatprep.subr.mxu0 0.0
    %1078 = vmatpush1.msra.mxu0 0.0
    %1079 = vmatprep.subr.mxu0 0.0
    %1080 = vmatpush1.msra.mxu0 0.0
    %1081 = vmatprep.subr.mxu0 0.0
    %1082 = vmatpush1.msra.mxu0 0.0
    %1083 = vmatprep.subr.mxu0 0.0
    %1084 = vmatpush1.msra.mxu0 0.0
    %1085 = vmatprep.subr.mxu0 0.0
    %1086 = vmatpush1.msra.mxu0 0.0
    %1087 = vmatprep.subr.mxu0 0.0
    %1088 = vmatpush1.msra.mxu0 0.0
    %1089 = vmatprep.subr.mxu0 0.0
    %1090 = vmatpush1.msra.mxu0 0.0
    %1091 = vmatprep.subr.mxu0 0.0
    %1092 = vmatpush1.msra.mxu0 0.0
    %1093 = vmatprep.subr.mxu0 0.0
    %1094 = vmatpush1.msra.mxu0 0.0
    %1095 = vmatprep.subr.mxu0 0.0
    %1096 = vmatpush1.msra.mxu0 0.0
    %1097 = vmatprep.subr.mxu0 0.0
    %1098 = vmatpush1.msra.mxu0 0.0
    %1099 = vmatprep.subr.mxu0 0.0
    %1100 = vmatpush1.msra.mxu0 0.0
    %1101 = vmatprep.mubr.f32.mxu0 0.0
    %1102 = vmatmul.mubr.f32.gmra.mrb[0].mxu0 %v1035
    %v1103 = vpop.f32.mrb[0].mxu0
    %v1104 = vadd.f32 0.0, %v1103
    %v1105 = vpop.f32.mrb[0].mxu0
    %1106 = vdwg.mxu0
    %1107 = vrot.lane.b32.xlu0 %v173, 48
    %v1108 = vpop.permute.xlu0 %1107
    %v1111 = vsel %vm197, %v1030, 0
    %1113 = vmatprep.subr.mxu0 0.0
    %1114 = vmatpush1.msra.mxu0 %v1108
    %1115 = vmatprep.subr.mxu0 0.0
    %1116 = vmatpush1.msra.mxu0 0.0
    %1117 = vmatprep.subr.mxu0 0.0
    %1118 = vmatpush1.msra.mxu0 0.0
    %1119 = vmatprep.subr.mxu0 0.0
    %1120 = vmatpush1.msra.mxu0 0.0
    %1121 = vmatprep.subr.mxu0 0.0
    %1122 = vmatpush1.msra.mxu0 0.0
    %1123 = vmatprep.subr.mxu0 0.0
    %1124 = vmatpush1.msra.mxu0 0.0
    %1125 = vmatprep.subr.mxu0 0.0
    %1126 = vmatpush1.msra.mxu0 0.0
    %1127 = vmatprep.subr.mxu0 0.0
    %1128 = vmatpush1.msra.mxu0 0.0
    %1129 = vmatprep.subr.mxu0 0.0
    %1130 = vmatpush1.msra.mxu0 0.0
    %1131 = vmatprep.subr.mxu0 0.0
    %1132 = vmatpush1.msra.mxu0 0.0
    %1133 = vmatprep.subr.mxu0 0.0
    %1134 = vmatpush1.msra.mxu0 0.0
    %1135 = vmatprep.subr.mxu0 0.0
    %1136 = vmatpush1.msra.mxu0 0.0
    %1137 = vmatprep.subr.mxu0 0.0
    %1138 = vmatpush1.msra.mxu0 0.0
    %1139 = vmatprep.subr.mxu0 0.0
    %1140 = vmatpush1.msra.mxu0 0.0
    %1141 = vmatprep.subr.mxu0 0.0
    %1142 = vmatpush1.msra.mxu0 0.0
    %1143 = vmatprep.subr.mxu0 0.0
    %1144 = vmatpush1.msra.mxu0 0.0
    %1145 = vmatprep.subr.mxu0 0.0
    %1146 = vmatpush1.msra.mxu0 0.0
    %1147 = vmatprep.subr.mxu0 0.0
    %1148 = vmatpush1.msra.mxu0 0.0
    %1149 = vmatprep.subr.mxu0 0.0
    %1150 = vmatpush1.msra.mxu0 0.0
    %1151 = vmatprep.subr.mxu0 0.0
    %1152 = vmatpush1.msra.mxu0 0.0
    %1153 = vmatprep.subr.mxu0 0.0
    %1154 = vmatpush1.msra.mxu0 0.0
    %1155 = vmatprep.subr.mxu0 0.0
    %1156 = vmatpush1.msra.mxu0 0.0
    %1157 = vmatprep.subr.mxu0 0.0
    %1158 = vmatpush1.msra.mxu0 0.0
    %1159 = vmatprep.subr.mxu0 0.0
    %1160 = vmatpush1.msra.mxu0 0.0
    %1161 = vmatprep.subr.mxu0 0.0
    %1162 = vmatpush1.msra.mxu0 0.0
    %1163 = vmatprep.subr.mxu0 0.0
    %1164 = vmatpush1.msra.mxu0 0.0
    %1165 = vmatprep.subr.mxu0 0.0
    %1166 = vmatpush1.msra.mxu0 0.0
    %1167 = vmatprep.subr.mxu0 0.0
    %1168 = vmatpush1.msra.mxu0 0.0
    %1169 = vmatprep.subr.mxu0 0.0
    %1170 = vmatpush1.msra.mxu0 0.0
    %1171 = vmatprep.subr.mxu0 0.0
    %1172 = vmatpush1.msra.mxu0 0.0
    %1173 = vmatprep.subr.mxu0 0.0
    %1174 = vmatpush1.msra.mxu0 0.0
    %1175 = vmatprep.subr.mxu0 0.0
    %1176 = vmatpush1.msra.mxu0 0.0
    %1177 = vmatprep.mubr.f32.mxu0 0.0
    %1178 = vmatmul.mubr.f32.gmra.mrb[0].mxu0 %v1111
    %v1179 = vpop.f32.mrb[0].mxu0
    %v1180 = vadd.f32 0.0, %v1179
    %v1181 = vpop.f32.mrb[0].mxu0
    %1182 = vdwg.mxu0
    %1183 = vrot.lane.b32.xlu0 %v168, 104
    %v1184 = vpop.permute.xlu0 %1183
    %1185 = vrot.lane.b32.xlu0 %v168, 72
    %v1186 = vpop.permute.xlu0 %1185
    %v1187 = vsel %vm197, %v1184, 0
    %v1189 = vsel %vm197, %v1186, 0
    %1191 = vmatprep.subr.mxu0 0.0
    %1192 = vmatpush1.xpose.msra.mxu0 %v1189
    %1193 = vmatprep.subr.mxu0 0.0
    %1194 = vmatpush1.xpose.msra.mxu0 0.0
    %1195 = vmatprep.subr.mxu0 0.0
    %1196 = vmatpush1.xpose.msra.mxu0 0.0
    %1197 = vmatprep.subr.mxu0 0.0
    %1198 = vmatpush1.xpose.msra.mxu0 0.0
    %1199 = vmatprep.subr.mxu0 0.0
    %1200 = vmatpush1.xpose.msra.mxu0 0.0
    %1201 = vmatprep.subr.mxu0 0.0
    %1202 = vmatpush1.xpose.msra.mxu0 0.0
    %1203 = vmatprep.subr.mxu0 0.0
    %1204 = vmatpush1.xpose.msra.mxu0 0.0
    %1205 = vmatprep.subr.mxu0 0.0
    %1206 = vmatpush1.xpose.msra.mxu0 0.0
    %1207 = vmatprep.subr.mxu0 0.0
    %1208 = vmatpush1.xpose.msra.mxu0 0.0
    %1209 = vmatprep.subr.mxu0 0.0
    %1210 = vmatpush1.xpose.msra.mxu0 0.0
    %1211 = vmatprep.subr.mxu0 0.0
    %1212 = vmatpush1.xpose.msra.mxu0 0.0
    %1213 = vmatprep.subr.mxu0 0.0
    %1214 = vmatpush1.xpose.msra.mxu0 0.0
    %1215 = vmatprep.subr.mxu0 0.0
    %1216 = vmatpush1.xpose.msra.mxu0 0.0
    %1217 = vmatprep.subr.mxu0 0.0
    %1218 = vmatpush1.xpose.msra.mxu0 0.0
    %1219 = vmatprep.subr.mxu0 0.0
    %1220 = vmatpush1.xpose.msra.mxu0 0.0
    %1221 = vmatprep.subr.mxu0 0.0
    %1222 = vmatpush1.xpose.msra.mxu0 0.0
    %1223 = vmatprep.subr.mxu0 0.0
    %1224 = vmatpush1.xpose.msra.mxu0 0.0
    %1225 = vmatprep.subr.mxu0 0.0
    %1226 = vmatpush1.xpose.msra.mxu0 0.0
    %1227 = vmatprep.subr.mxu0 0.0
    %1228 = vmatpush1.xpose.msra.mxu0 0.0
    %1229 = vmatprep.subr.mxu0 0.0
    %1230 = vmatpush1.xpose.msra.mxu0 0.0
    %1231 = vmatprep.subr.mxu0 0.0
    %1232 = vmatpush1.xpose.msra.mxu0 0.0
    %1233 = vmatprep.subr.mxu0 0.0
    %1234 = vmatpush1.xpose.msra.mxu0 0.0
    %1235 = vmatprep.subr.mxu0 0.0
    %1236 = vmatpush1.xpose.msra.mxu0 0.0
    %1237 = vmatprep.subr.mxu0 0.0
    %1238 = vmatpush1.xpose.msra.mxu0 0.0
    %1239 = vmatprep.subr.mxu0 0.0
    %1240 = vmatpush1.xpose.msra.mxu0 0.0
    %1241 = vmatprep.subr.mxu0 0.0
    %1242 = vmatpush1.xpose.msra.mxu0 0.0
    %1243 = vmatprep.subr.mxu0 0.0
    %1244 = vmatpush1.xpose.msra.mxu0 0.0
    %1245 = vmatprep.subr.mxu0 0.0
    %1246 = vmatpush1.xpose.msra.mxu0 0.0
    %1247 = vmatprep.subr.mxu0 0.0
    %1248 = vmatpush1.xpose.msra.mxu0 0.0
    %1249 = vmatprep.subr.mxu0 0.0
    %1250 = vmatpush1.xpose.msra.mxu0 0.0
    %1251 = vmatprep.subr.mxu0 0.0
    %1252 = vmatpush1.xpose.msra.mxu0 0.0
    %1253 = vmatprep.subr.mxu0 0.0
    %1254 = vmatpush1.xpose.msra.mxu0 0.0
    %1255 = vmatprep.mubr.f32.mxu0 0.0
    %1256 = vmatmul.mubr.f32.gmra.mrb[0].mxu0 %v1187
    %v1257 = vpop.f32.mrb[0].mxu0
    %v1258 = vadd.f32 %v187, %v1257
    %v1259 = vpop.f32.mrb[0].mxu0
    %1260 = vdwg.mxu0
    %1261 = vrot.lane.b32.xlu0 %v173, 104
    %v1262 = vpop.permute.xlu0 %1261
    %1263 = vrot.lane.b32.xlu0 %v173, 72
    %v1264 = vpop.permute.xlu0 %1263
    %v1265 = vsel %vm197, %v1262, 0
    %v1267 = vsel %vm197, %v1264, 0
    %1269 = vmatprep.subr.mxu0 0.0
    %1270 = vmatpush1.xpose.msra.mxu0 %v1267
    %1271 = vmatprep.subr.mxu0 0.0
    %1272 = vmatpush1.xpose.msra.mxu0 0.0
    %1273 = vmatprep.subr.mxu0 0.0
    %1274 = vmatpush1.xpose.msra.mxu0 0.0
    %1275 = vmatprep.subr.mxu0 0.0
    %1276 = vmatpush1.xpose.msra.mxu0 0.0
    %1277 = vmatprep.subr.mxu0 0.0
    %1278 = vmatpush1.xpose.msra.mxu0 0.0
    %1279 = vmatprep.subr.mxu0 0.0
    %1280 = vmatpush1.xpose.msra.mxu0 0.0
    %1281 = vmatprep.subr.mxu0 0.0
    %1282 = vmatpush1.xpose.msra.mxu0 0.0
    %1283 = vmatprep.subr.mxu0 0.0
    %1284 = vmatpush1.xpose.msra.mxu0 0.0
    %1285 = vmatprep.subr.mxu0 0.0
    %1286 = vmatpush1.xpose.msra.mxu0 0.0
    %1287 = vmatprep.subr.mxu0 0.0
    %1288 = vmatpush1.xpose.msra.mxu0 0.0
    %1289 = vmatprep.subr.mxu0 0.0
    %1290 = vmatpush1.xpose.msra.mxu0 0.0
    %1291 = vmatprep.subr.mxu0 0.0
    %1292 = vmatpush1.xpose.msra.mxu0 0.0
    %1293 = vmatprep.subr.mxu0 0.0
    %1294 = vmatpush1.xpose.msra.mxu0 0.0
    %1295 = vmatprep.subr.mxu0 0.0
    %1296 = vmatpush1.xpose.msra.mxu0 0.0
    %1297 = vmatprep.subr.mxu0 0.0
    %1298 = vmatpush1.xpose.msra.mxu0 0.0
    %1299 = vmatprep.subr.mxu0 0.0
    %1300 = vmatpush1.xpose.msra.mxu0 0.0
    %1301 = vmatprep.subr.mxu0 0.0
    %1302 = vmatpush1.xpose.msra.mxu0 0.0
    %1303 = vmatprep.subr.mxu0 0.0
    %1304 = vmatpush1.xpose.msra.mxu0 0.0
    %1305 = vmatprep.subr.mxu0 0.0
    %1306 = vmatpush1.xpose.msra.mxu0 0.0
    %1307 = vmatprep.subr.mxu0 0.0
    %1308 = vmatpush1.xpose.msra.mxu0 0.0
    %1309 = vmatprep.subr.mxu0 0.0
    %1310 = vmatpush1.xpose.msra.mxu0 0.0
    %1311 = vmatprep.subr.mxu0 0.0
    %1312 = vmatpush1.xpose.msra.mxu0 0.0
    %1313 = vmatprep.subr.mxu0 0.0
    %1314 = vmatpush1.xpose.msra.mxu0 0.0
    %1315 = vmatprep.subr.mxu0 0.0
    %1316 = vmatpush1.xpose.msra.mxu0 0.0
    %1317 = vmatprep.subr.mxu0 0.0
    %1318 = vmatpush1.xpose.msra.mxu0 0.0
    %1319 = vmatprep.subr.mxu0 0.0
    %1320 = vmatpush1.xpose.msra.mxu0 0.0
    %1321 = vmatprep.subr.mxu0 0.0
    %1322 = vmatpush1.xpose.msra.mxu0 0.0
    %1323 = vmatprep.subr.mxu0 0.0
    %1324 = vmatpush1.xpose.msra.mxu0 0.0
    %1325 = vmatprep.subr.mxu0 0.0
    %1326 = vmatpush1.xpose.msra.mxu0 0.0
    %1327 = vmatprep.subr.mxu0 0.0
    %1328 = vmatpush1.xpose.msra.mxu0 0.0
    %1329 = vmatprep.subr.mxu0 0.0
    %1330 = vmatpush1.xpose.msra.mxu0 0.0
    %1331 = vmatprep.subr.mxu0 0.0
    %1332 = vmatpush1.xpose.msra.mxu0 0.0
    %1333 = vmatprep.mubr.f32.mxu0 0.0
    %1334 = vmatmul.mubr.f32.gmra.mrb[0].mxu0 %v1265
    %v1335 = vpop.f32.mrb[0].mxu0
    %v1336 = vadd.f32 %v191, %v1335
    %v1337 = vpop.f32.mrb[0].mxu0
    %1338 = vdwg.mxu0
    %v1339 = vsel %vm197, %v1258, -inf
    %1340 = vmax.xlane.f32.xlu0 %v1339
    %v1341 = vpop.xlane.xlu0 %1340
    %v1342 = vsel %vm197, %v1336, -inf
    %1343 = vmax.xlane.f32.xlu0 %v1342
    %v1344 = vpop.xlane.xlu0 %1343
    %v1345 = vsub.f32 %v1258, %v1341
    %v1346 = vsub.f32 %v1336, %v1344
    %v1347 = vmul.f32 %v1345, 1.442695
    %v1348 = vpow.pop %v1347
    %v1349 = vmul.f32 %v1346, 1.442695
    %v1350 = vpow.pop %v1349
    %v1351 = vsel %vm197, %v1348, 0.0
    %1352 = vadd.xlane.f32.xlu0 %v1351
    %v1353 = vpop.xlane.xlu0 %1352
    %v1354 = vsel %vm197, %v1350, 0.0
    %1355 = vadd.xlane.f32.xlu0 %v1354
    %v1356 = vpop.xlane.xlu0 %1355
    %v1357 = vrcp.pop %v1353
    %v1358 = vrcp.pop %v1356
    %v1359 = vmul.f32 %v1348, %v1357
    %v1360 = vmul.f32 %v1350, %v1358
    %1361 = vrot.lane.b32.xlu0 %v168, 40
    %v1362 = vpop.permute.xlu0 %1361
    %v1365 = vsel %vm197, %v1359, 0
    %1367 = vmatprep.subr.mxu0 0.0
    %1368 = vmatpush1.msra.mxu0 %v1362
    %1369 = vmatprep.subr.mxu0 0.0
    %1370 = vmatpush1.msra.mxu0 0.0
    %1371 = vmatprep.subr.mxu0 0.0
    %1372 = vmatpush1.msra.mxu0 0.0
    %1373 = vmatprep.subr.mxu0 0.0
    %1374 = vmatpush1.msra.mxu0 0.0
    %1375 = vmatprep.subr.mxu0 0.0
    %1376 = vmatpush1.msra.mxu0 0.0
    %1377 = vmatprep.subr.mxu0 0.0
    %1378 = vmatpush1.msra.mxu0 0.0
    %1379 = vmatprep.subr.mxu0 0.0
    %1380 = vmatpush1.msra.mxu0 0.0
    %1381 = vmatprep.subr.mxu0 0.0
    %1382 = vmatpush1.msra.mxu0 0.0
    %1383 = vmatprep.subr.mxu0 0.0
    %1384 = vmatpush1.msra.mxu0 0.0
    %1385 = vmatprep.subr.mxu0 0.0
    %1386 = vmatpush1.msra.mxu0 0.0
    %1387 = vmatprep.subr.mxu0 0.0
    %1388 = vmatpush1.msra.mxu0 0.0
    %1389 = vmatprep.subr.mxu0 0.0
    %1390 = vmatpush1.msra.mxu0 0.0
    %1391 = vmatprep.subr.mxu0 0.0
    %1392 = vmatpush1.msra.mxu0 0.0
    %1393 = vmatprep.subr.mxu0 0.0
    %1394 = vmatpush1.msra.mxu0 0.0
    %1395 = vmatprep.subr.mxu0 0.0
    %1396 = vmatpush1.msra.mxu0 0.0
    %1397 = vmatprep.subr.mxu0 0.0
    %1398 = vmatpush1.msra.mxu0 0.0
    %1399 = vmatprep.subr.mxu0 0.0
    %1400 = vmatpush1.msra.mxu0 0.0
    %1401 = vmatprep.subr.mxu0 0.0
    %1402 = vmatpush1.msra.mxu0 0.0
    %1403 = vmatprep.subr.mxu0 0.0
    %1404 = vmatpush1.msra.mxu0 0.0
    %1405 = vmatprep.subr.mxu0 0.0
    %1406 = vmatpush1.msra.mxu0 0.0
    %1407 = vmatprep.subr.mxu0 0.0
    %1408 = vmatpush1.msra.mxu0 0.0
    %1409 = vmatprep.subr.mxu0 0.0
    %1410 = vmatpush1.msra.mxu0 0.0
    %1411 = vmatprep.subr.mxu0 0.0
    %1412 = vmatpush1.msra.mxu0 0.0
    %1413 = vmatprep.subr.mxu0 0.0
    %1414 = vmatpush1.msra.mxu0 0.0
    %1415 = vmatprep.subr.mxu0 0.0
    %1416 = vmatpush1.msra.mxu0 0.0
    %1417 = vmatprep.subr.mxu0 0.0
    %1418 = vmatpush1.msra.mxu0 0.0
    %1419 = vmatprep.subr.mxu0 0.0
    %1420 = vmatpush1.msra.mxu0 0.0
    %1421 = vmatprep.subr.mxu0 0.0
    %1422 = vmatpush1.msra.mxu0 0.0
    %1423 = vmatprep.subr.mxu0 0.0
    %1424 = vmatpush1.msra.mxu0 0.0
    %1425 = vmatprep.subr.mxu0 0.0
    %1426 = vmatpush1.msra.mxu0 0.0
    %1427 = vmatprep.subr.mxu0 0.0
    %1428 = vmatpush1.msra.mxu0 0.0
    %1429 = vmatprep.subr.mxu0 0.0
    %1430 = vmatpush1.msra.mxu0 0.0
    %1431 = vmatprep.mubr.f32.mxu0 0.0
    %1432 = vmatmul.mubr.f32.gmra.mrb[0].mxu0 %v1365
    %v1433 = vpop.f32.mrb[0].mxu0
    %v1434 = vadd.f32 0.0, %v1433
    %v1435 = vpop.f32.mrb[0].mxu0
    %1436 = vdwg.mxu0
    %1437 = vrot.lane.b32.xlu0 %v173, 40
    %v1438 = vpop.permute.xlu0 %1437
    %v1441 = vsel %vm197, %v1360, 0
    %1443 = vmatprep.subr.mxu0 0.0
    %1444 = vmatpush1.msra.mxu0 %v1438
    %1445 = vmatprep.subr.mxu0 0.0
    %1446 = vmatpush1.msra.mxu0 0.0
    %1447 = vmatprep.subr.mxu0 0.0
    %1448 = vmatpush1.msra.mxu0 0.0
    %1449 = vmatprep.subr.mxu0 0.0
    %1450 = vmatpush1.msra.mxu0 0.0
    %1451 = vmatprep.subr.mxu0 0.0
    %1452 = vmatpush1.msra.mxu0 0.0
    %1453 = vmatprep.subr.mxu0 0.0
    %1454 = vmatpush1.msra.mxu0 0.0
    %1455 = vmatprep.subr.mxu0 0.0
    %1456 = vmatpush1.msra.mxu0 0.0
    %1457 = vmatprep.subr.mxu0 0.0
    %1458 = vmatpush1.msra.mxu0 0.0
    %1459 = vmatprep.subr.mxu0 0.0
    %1460 = vmatpush1.msra.mxu0 0.0
    %1461 = vmatprep.subr.mxu0 0.0
    %1462 = vmatpush1.msra.mxu0 0.0
    %1463 = vmatprep.subr.mxu0 0.0
    %1464 = vmatpush1.msra.mxu0 0.0
    %1465 = vmatprep.subr.mxu0 0.0
    %1466 = vmatpush1.msra.mxu0 0.0
    %1467 = vmatprep.subr.mxu0 0.0
    %1468 = vmatpush1.msra.mxu0 0.0
    %1469 = vmatprep.subr.mxu0 0.0
    %1470 = vmatpush1.msra.mxu0 0.0
    %1471 = vmatprep.subr.mxu0 0.0
    %1472 = vmatpush1.msra.mxu0 0.0
    %1473 = vmatprep.subr.mxu0 0.0
    %1474 = vmatpush1.msra.mxu0 0.0
    %1475 = vmatprep.subr.mxu0 0.0
    %1476 = vmatpush1.msra.mxu0 0.0
    %1477 = vmatprep.subr.mxu0 0.0
    %1478 = vmatpush1.msra.mxu0 0.0
    %1479 = vmatprep.subr.mxu0 0.0
    %1480 = vmatpush1.msra.mxu0 0.0
    %1481 = vmatprep.subr.mxu0 0.0
    %1482 = vmatpush1.msra.mxu0 0.0
    %1483 = vmatprep.subr.mxu0 0.0
    %1484 = vmatpush1.msra.mxu0 0.0
    %1485 = vmatprep.subr.mxu0 0.0
    %1486 = vmatpush1.msra.mxu0 0.0
    %1487 = vmatprep.subr.mxu0 0.0
    %1488 = vmatpush1.msra.mxu0 0.0
    %1489 = vmatprep.subr.mxu0 0.0
    %1490 = vmatpush1.msra.mxu0 0.0
    %1491 = vmatprep.subr.mxu0 0.0
    %1492 = vmatpush1.msra.mxu0 0.0
    %1493 = vmatprep.subr.mxu0 0.0
    %1494 = vmatpush1.msra.mxu0 0.0
    %1495 = vmatprep.subr.mxu0 0.0
    %1496 = vmatpush1.msra.mxu0 0.0
    %1497 = vmatprep.subr.mxu0 0.0
    %1498 = vmatpush1.msra.mxu0 0.0
    %1499 = vmatprep.subr.mxu0 0.0
    %1500 = vmatpush1.msra.mxu0 0.0
    %1501 = vmatprep.subr.mxu0 0.0
    %1502 = vmatpush1.msra.mxu0 0.0
    %1503 = vmatprep.subr.mxu0 0.0
    %1504 = vmatpush1.msra.mxu0 0.0
    %1505 = vmatprep.subr.mxu0 0.0
    %1506 = vmatpush1.msra.mxu0 0.0
    %1507 = vmatprep.mubr.f32.mxu0 0.0
    %1508 = vmatmul.mubr.f32.gmra.mrb[0].mxu0 %v1441
    %v1509 = vpop.f32.mrb[0].mxu0
    %v1510 = vadd.f32 0.0, %v1509
    %v1511 = vpop.f32.mrb[0].mxu0
    %1512 = vdwg.mxu0
    %1515 = vrot.lane.b32.xlu0 %v774, 8
    %v1516 = vpop.permute.xlu0 %1515
    %1517 = vrot.lane.b32.xlu0 %v850, 8
    %v1518 = vpop.permute.xlu0 %1517
    %1523 = vrot.lane.b32.xlu0 %v1104, 16
    %v1524 = vpop.permute.xlu0 %1523
    %1525 = vrot.lane.b32.xlu0 %v1180, 16
    %v1526 = vpop.permute.xlu0 %1525
    %1531 = vrot.lane.b32.xlu0 %v1434, 24
    %v1532 = vpop.permute.xlu0 %1531
    %1533 = vrot.lane.b32.xlu0 %v1510, 24
    %v1534 = vpop.permute.xlu0 %1533
    %v1537 = vsel %vm197, %v444, %v1516
    %v1538 = vsel %vm197, %v520, %v1518
    %vm1539 = vcmask 130048
    %v1540 = vsel %vm1539, %v1537, %v1524
    %v1541 = vsel %vm1539, %v1538, %v1526
    %vm1542 = vcmask 195584
    %v1543 = vsel %vm1542, %v1540, %v1532
    %v1544 = vsel %vm1542, %v1541, %v1534
    %v1546 = vlaneseq
    %v1547 = vshrl.u32 %v1546, 7
    %v1548 = vsub.s32 0, %v1547
    %v1549 = vrot.slane %v59, %v1548
    %v1552 = vsel %vm61, %v1543, 0
    %v1555 = vsel %vm61, %v1544, 0
    %1557 = vmatprep.subr.mxu0 0.0
    %1558 = vmatpush1.msra.mxu0 %v41
    %1559 = vmatprep.subr.mxu0 0.0
    %1560 = vmatpush1.msra.mxu0 %v42
    %1561 = vmatprep.subr.mxu0 0.0
    %1562 = vmatpush1.msra.mxu0 %v43
    %1563 = vmatprep.subr.mxu0 0.0
    %1564 = vmatpush1.msra.mxu0 %v44
    %1565 = vmatprep.subr.mxu0 0.0
    %1566 = vmatpush1.msra.mxu0 0.0
    %1567 = vmatprep.subr.mxu0 0.0
    %1568 = vmatpush1.msra.mxu0 0.0
    %1569 = vmatprep.subr.mxu0 0.0
    %1570 = vmatpush1.msra.mxu0 0.0
    %1571 = vmatprep.subr.mxu0 0.0
    %1572 = vmatpush1.msra.mxu0 0.0
    %1573 = vmatprep.subr.mxu0 0.0
    %1574 = vmatpush1.msra.mxu0 0.0
    %1575 = vmatprep.subr.mxu0 0.0
    %1576 = vmatpush1.msra.mxu0 0.0
    %1577 = vmatprep.subr.mxu0 0.0
    %1578 = vmatpush1.msra.mxu0 0.0
    %1579 = vmatprep.subr.mxu0 0.0
    %1580 = vmatpush1.msra.mxu0 0.0
    %1581 = vmatprep.subr.mxu0 0.0
    %1582 = vmatpush1.msra.mxu0 0.0
    %1583 = vmatprep.subr.mxu0 0.0
    %1584 = vmatpush1.msra.mxu0 0.0
    %1585 = vmatprep.subr.mxu0 0.0
    %1586 = vmatpush1.msra.mxu0 0.0
    %1587 = vmatprep.subr.mxu0 0.0
    %1588 = vmatpush1.msra.mxu0 0.0
    %1589 = vmatprep.subr.mxu0 0.0
    %1590 = vmatpush1.msra.mxu0 0.0
    %1591 = vmatprep.subr.mxu0 0.0
    %1592 = vmatpush1.msra.mxu0 0.0
    %1593 = vmatprep.subr.mxu0 0.0
    %1594 = vmatpush1.msra.mxu0 0.0
    %1595 = vmatprep.subr.mxu0 0.0
    %1596 = vmatpush1.msra.mxu0 0.0
    %1597 = vmatprep.subr.mxu0 0.0
    %1598 = vmatpush1.msra.mxu0 0.0
    %1599 = vmatprep.subr.mxu0 0.0
    %1600 = vmatpush1.msra.mxu0 0.0
    %1601 = vmatprep.subr.mxu0 0.0
    %1602 = vmatpush1.msra.mxu0 0.0
    %1603 = vmatprep.subr.mxu0 0.0
    %1604 = vmatpush1.msra.mxu0 0.0
    %1605 = vmatprep.subr.mxu0 0.0
    %1606 = vmatpush1.msra.mxu0 0.0
    %1607 = vmatprep.subr.mxu0 0.0
    %1608 = vmatpush1.msra.mxu0 0.0
    %1609 = vmatprep.subr.mxu0 0.0
    %1610 = vmatpush1.msra.mxu0 0.0
    %1611 = vmatprep.subr.mxu0 0.0
    %1612 = vmatpush1.msra.mxu0 0.0
    %1613 = vmatprep.subr.mxu0 0.0
    %1614 = vmatpush1.msra.mxu0 0.0
    %1615 = vmatprep.subr.mxu0 0.0
    %1616 = vmatpush1.msra.mxu0 0.0
    %1617 = vmatprep.subr.mxu0 0.0
    %1618 = vmatpush1.msra.mxu0 0.0
    %1619 = vmatprep.subr.mxu0 0.0
    %1620 = vmatpush1.msra.mxu0 0.0
    %1621 = vmatprep.mubr.f32.mxu0 0.0
    %1622 = vmatmul.mubr.f32.gmra.mrb[0].mxu0 %v1552
    %v1623 = vpop.f32.mrb[0].mxu0
    %v1624 = vadd.f32 %v1549, %v1623
    %v1625 = vpop.f32.mrb[0].mxu0
    %1626 = vmatprep.mubr.f32.mxu0 0.0
    %1627 = vmatmul.mubr.f32.gmra.mrb[0].mxu0 %v1555
    %v1628 = vpop.f32.mrb[0].mxu0
    %v1629 = vadd.f32 %v1549, %v1628
    %v1630 = vpop.f32.mrb[0].mxu0
    %1631 = vdwg.mxu0
    %v1632 = vadd.f32 %v1624, %v35
    %v1633 = vadd.f32 %v1629, %v36
    %v1634 = vsel %vm61, %v1632, 0.0
    %1635 = vadd.xlane.f32.xlu0 %v1634
    %v1636 = vpop.xlane.xlu0 %1635
    %v1637 = vsel %vm61, %v1633, 0.0
    %1638 = vadd.xlane.f32.xlu0 %v1637
    %v1639 = vpop.xlane.xlu0 %1638
    %v1640 = vmul.f32 %v1636, %v68
    %v1641 = vmul.f32 %v1639, %v68
    %v1642 = vsub.f32 %v1632, %v1640
    %v1643 = vsub.f32 %v1633, %v1641
    %v1644 = vmul.f32 %v1642, %v1642
    %v1645 = vmul.f32 %v1643, %v1643
    %v1646 = vsel %vm61, %v1644, 0.0
    %1647 = vadd.xlane.f32.xlu0 %v1646
    %v1648 = vpop.xlane.xlu0 %1647
    %v1649 = vsel %vm61, %v1645, 0.0
    %1650 = vadd.xlane.f32.xlu0 %v1649
    %v1651 = vpop.xlane.xlu0 %1650
    %v1652 = vmul.f32 %v1648, %v68
    %v1653 = vmul.f32 %v1651, %v68
    %v1654 = vadd.f32 %v1652, 1e-06
    %v1655 = vadd.f32 %v1653, 1e-06
    %v1656 = vrsqrt.pop %v1654
    %v1657 = vrsqrt.pop %v1655
    %v1658 = vmul.f32 %v1642, %v1656
    %v1659 = vmul.f32 %v1643, %v1657
    %v1661 = vlaneseq
    %v1662 = vshrl.u32 %v1661, 7
    %v1663 = vsub.s32 0, %v1662
    %v1664 = vrot.slane %v58, %v1663
    %v1667 = vsel %vm61, %v1658, 0
    %v1670 = vsel %vm61, %v1659, 0
    %1672 = vmatprep.subr.mxu0 0.0
    %1673 = vmatpush1.msra.mxu0 %v45
    %1674 = vmatprep.subr.mxu0 0.0
    %1675 = vmatpush1.msra.mxu0 %v46
    %1676 = vmatprep.subr.mxu0 0.0
    %1677 = vmatpush1.msra.mxu0 %v47
    %1678 = vmatprep.subr.mxu0 0.0
    %1679 = vmatpush1.msra.mxu0 %v48
    %1680 = vmatprep.subr.mxu0 0.0
    %1681 = vmatpush1.msra.mxu0 0.0
    %1682 = vmatprep.subr.mxu0 0.0
    %1683 = vmatpush1.msra.mxu0 0.0
    %1684 = vmatprep.subr.mxu0 0.0
    %1685 = vmatpush1.msra.mxu0 0.0
    %1686 = vmatprep.subr.mxu0 0.0
    %1687 = vmatpush1.msra.mxu0 0.0
    %1688 = vmatprep.subr.mxu0 0.0
    %1689 = vmatpush1.msra.mxu0 0.0
    %1690 = vmatprep.subr.mxu0 0.0
    %1691 = vmatpush1.msra.mxu0 0.0
    %1692 = vmatprep.subr.mxu0 0.0
    %1693 = vmatpush1.msra.mxu0 0.0
    %1694 = vmatprep.subr.mxu0 0.0
    %1695 = vmatpush1.msra.mxu0 0.0
    %1696 = vmatprep.subr.mxu0 0.0
    %1697 = vmatpush1.msra.mxu0 0.0
    %1698 = vmatprep.subr.mxu0 0.0
    %1699 = vmatpush1.msra.mxu0 0.0
    %1700 = vmatprep.subr.mxu0 0.0
    %1701 = vmatpush1.msra.mxu0 0.0
    %1702 = vmatprep.subr.mxu0 0.0
    %1703 = vmatpush1.msra.mxu0 0.0
    %1704 = vmatprep.subr.mxu0 0.0
    %1705 = vmatpush1.msra.mxu0 0.0
    %1706 = vmatprep.subr.mxu0 0.0
    %1707 = vmatpush1.msra.mxu0 0.0
    %1708 = vmatprep.subr.mxu0 0.0
    %1709 = vmatpush1.msra.mxu0 0.0
    %1710 = vmatprep.subr.mxu0 0.0
    %1711 = vmatpush1.msra.mxu0 0.0
    %1712 = vmatprep.subr.mxu0 0.0
    %1713 = vmatpush1.msra.mxu0 0.0
    %1714 = vmatprep.subr.mxu0 0.0
    %1715 = vmatpush1.msra.mxu0 0.0
    %1716 = vmatprep.subr.mxu0 0.0
    %1717 = vmatpush1.msra.mxu0 0.0
    %1718 = vmatprep.subr.mxu0 0.0
    %1719 = vmatpush1.msra.mxu0 0.0
    %1720 = vmatprep.subr.mxu0 0.0
    %1721 = vmatpush1.msra.mxu0 0.0
    %1722 = vmatprep.subr.mxu0 0.0
    %1723 = vmatpush1.msra.mxu0 0.0
    %1724 = vmatprep.subr.mxu0 0.0
    %1725 = vmatpush1.msra.mxu0 0.0
    %1726 = vmatprep.subr.mxu0 0.0
    %1727 = vmatpush1.msra.mxu0 0.0
    %1728 = vmatprep.subr.mxu0 0.0
    %1729 = vmatpush1.msra.mxu0 0.0
    %1730 = vmatprep.subr.mxu0 0.0
    %1731 = vmatpush1.msra.mxu0 0.0
    %1732 = vmatprep.subr.mxu0 0.0
    %1733 = vmatpush1.msra.mxu0 0.0
    %1734 = vmatprep.subr.mxu0 0.0
    %1735 = vmatpush1.msra.mxu0 0.0
    %1736 = vmatprep.mubr.f32.mxu0 0.0
    %1737 = vmatmul.mubr.f32.gmra.mrb[0].mxu0 %v1667
    %v1738 = vpop.f32.mrb[0].mxu0
    %v1739 = vadd.f32 %v1664, %v1738
    %v1740 = vpop.f32.mrb[0].mxu0
    %1741 = vmatprep.mubr.f32.mxu0 0.0
    %1742 = vmatmul.mubr.f32.gmra.mrb[0].mxu0 %v1670
    %v1743 = vpop.f32.mrb[0].mxu0
    %v1744 = vadd.f32 %v1664, %v1743
    %v1745 = vpop.f32.mrb[0].mxu0
    %1746 = vdwg.mxu0
    %v1747 = vmax.f32 %v1739, 0.0
    %v1748 = vmax.f32 %v1744, 0.0
    %v1750 = vlaneseq
    %v1751 = vshrl.u32 %v1750, 7
    %v1752 = vsub.s32 0, %v1751
    %v1753 = vrot.slane %v60, %v1752
    %vm1755 = vcmask 523264
    %v1757 = vsel %vm1755, %v1747, 0
    %v1760 = vsel %vm1755, %v1748, 0
    %1762 = vmatprep.subr.mxu0 0.0
    %1763 = vmatpush1.msra.mxu0 %v49
    %1764 = vmatprep.subr.mxu0 0.0
    %1765 = vmatpush1.msra.mxu0 %v50
    %1766 = vmatprep.subr.mxu0 0.0
    %1767 = vmatpush1.msra.mxu0 %v51
    %1768 = vmatprep.subr.mxu0 0.0
    %1769 = vmatpush1.msra.mxu0 %v52
    %1770 = vmatprep.subr.mxu0 0.0
    %1771 = vmatpush1.msra.mxu0 %v53
    %1772 = vmatprep.subr.mxu0 0.0
    %1773 = vmatpush1.msra.mxu0 %v54
    %1774 = vmatprep.subr.mxu0 0.0
    %1775 = vmatpush1.msra.mxu0 %v55
    %1776 = vmatprep.subr.mxu0 0.0
    %1777 = vmatpush1.msra.mxu0 %v56
    %1778 = vmatprep.subr.mxu0 0.0
    %1779 = vmatpush1.msra.mxu0 0.0
    %1780 = vmatprep.subr.mxu0 0.0
    %1781 = vmatpush1.msra.mxu0 0.0
    %1782 = vmatprep.subr.mxu0 0.0
    %1783 = vmatpush1.msra.mxu0 0.0
    %1784 = vmatprep.subr.mxu0 0.0
    %1785 = vmatpush1.msra.mxu0 0.0
    %1786 = vmatprep.subr.mxu0 0.0
    %1787 = vmatpush1.msra.mxu0 0.0
    %1788 = vmatprep.subr.mxu0 0.0
    %1789 = vmatpush1.msra.mxu0 0.0
    %1790 = vmatprep.subr.mxu0 0.0
    %1791 = vmatpush1.msra.mxu0 0.0
    %1792 = vmatprep.subr.mxu0 0.0
    %1793 = vmatpush1.msra.mxu0 0.0
    %1794 = vmatprep.subr.mxu0 0.0
    %1795 = vmatpush1.msra.mxu0 0.0
    %1796 = vmatprep.subr.mxu0 0.0
    %1797 = vmatpush1.msra.mxu0 0.0
    %1798 = vmatprep.subr.mxu0 0.0
    %1799 = vmatpush1.msra.mxu0 0.0
    %1800 = vmatprep.subr.mxu0 0.0
    %1801 = vmatpush1.msra.mxu0 0.0
    %1802 = vmatprep.subr.mxu0 0.0
    %1803 = vmatpush1.msra.mxu0 0.0
    %1804 = vmatprep.subr.mxu0 0.0
    %1805 = vmatpush1.msra.mxu0 0.0
    %1806 = vmatprep.subr.mxu0 0.0
    %1807 = vmatpush1.msra.mxu0 0.0
    %1808 = vmatprep.subr.mxu0 0.0
    %1809 = vmatpush1.msra.mxu0 0.0
    %1810 = vmatprep.subr.mxu0 0.0
    %1811 = vmatpush1.msra.mxu0 0.0
    %1812 = vmatprep.subr.mxu0 0.0
    %1813 = vmatpush1.msra.mxu0 0.0
    %1814 = vmatprep.subr.mxu0 0.0
    %1815 = vmatpush1.msra.mxu0 0.0
    %1816 = vmatprep.subr.mxu0 0.0
    %1817 = vmatpush1.msra.mxu0 0.0
    %1818 = vmatprep.subr.mxu0 0.0
    %1819 = vmatpush1.msra.mxu0 0.0
    %1820 = vmatprep.subr.mxu0 0.0
    %1821 = vmatpush1.msra.mxu0 0.0
    %1822 = vmatprep.subr.mxu0 0.0
    %1823 = vmatpush1.msra.mxu0 0.0
    %1824 = vmatprep.subr.mxu0 0.0
    %1825 = vmatpush1.msra.mxu0 0.0
    %1826 = vmatprep.mubr.f32.mxu0 0.0
    %1827 = vmatmul.mubr.f32.gmra.mrb[0].mxu0 %v1757
    %v1828 = vpop.f32.mrb[0].mxu0
    %v1829 = vadd.f32 %v1753, %v1828
    %v1830 = vpop.f32.mrb[0].mxu0
    %1831 = vmatprep.mubr.f32.mxu0 0.0
    %1832 = vmatmul.mubr.f32.gmra.mrb[0].mxu0 %v1760
    %v1833 = vpop.f32.mrb[0].mxu0
    %v1834 = vadd.f32 %v1753, %v1833
    %v1835 = vpop.f32.mrb[0].mxu0
    %1836 = vdwg.mxu0
    %v1837 = vadd.f32 %v1829, %v1632
    %v1838 = vadd.f32 %v1834, %v1633
    %1839 = vst.msk [vmem:[#allocation5] sm:$0xff] %vm61, %v1837
    %1840 = vst.msk [vmem:[#allocation5 + $0x8] sm:$0xff] %vm61, %v1838
    // Predicated region
    $region26: #{tpu_custom_call.1} parent=1 // pred_check
      _
    $region27: #{tpu_custom_call.1} parent=1 // pred_check_branch
      %1842 = sbr.rel (0) target = $region29
    $region28: #{tpu_custom_call.1} parent=1 // pred_region
      %s1844 = ssub.s32 256, 256
      %1845 = vsyncadd [#allocation4], %s1844
      %s1846 = sshll.u32 [#allocation5], 4
      %s1847 = int_to_ptr.vmem [resolvable:$true] %s1846
      %1852 = dma.vmem_to_hbm [thread:$0]  %s1847, 256, %s5, [#allocation4], 128, 128, 8
    $region29: #{tpu_custom_call.1} parent=1 // pred_fallthru
      _
    // Predicated region
    $region30: #{tpu_custom_call.1} parent=1 // pred_check
      _
    $region31: #{tpu_custom_call.1} parent=1 // pred_check_branch
      %1854 = sbr.rel (0) target = $region33
    $region32: #{tpu_custom_call.1} parent=1 // pred_region
      %1855 = dma.done [#allocation4], 256
    $region33: #{tpu_custom_call.1} parent=1 // pred_fallthru
      _
    %1856 = vsyncpa [#allocation3], 1
    %1857 = vsyncpa [#allocation4], 1

</llo_original>
